<compile_context>
chip_gen: v7x
topology: tpu7x:2x2x1
jax: 0.10.0
libtpu: 0.0.40
codegen_flags: <defaults>
</compile_context>

<pallas_src>
import functools
import math

import jax
import jax.numpy as jnp
from jax.experimental import pallas as pl
from jax.experimental.pallas import tpu as pltpu

EPS = 1e-5
LANE = 128


def _bn_scale_shift(v, gamma, beta):
    """Training-mode BatchNorm1d folded into per-feature scale/shift (f32)."""
    v = v.astype(jnp.float32)
    mean = jnp.mean(v, axis=0, keepdims=True)
    var = jnp.maximum(jnp.mean(v * v, axis=0, keepdims=True) - mean * mean, 0.0)
    scale = gamma * jax.lax.rsqrt(var + EPS)
    shift = beta - mean * scale
    return scale, shift


def _mlp_body_kernel(x_ref, s_in_ref, t_in_ref,
                     w1_ref, b1_ref, w2_ref, b2_ref,
                     w3_ref, b3_ref, w4_ref, b4_ref,
                     z_ref):
    """input BN (precomputed full-batch scale/shift) + layer1..4 + residual."""
    f32 = jnp.float32
    bf16 = jnp.bfloat16

    # Input BatchNorm as fused scale/shift (stats hoisted out of the kernel).
    x = x_ref[...].astype(f32) * s_in_ref[...] + t_in_ref[...]

    # bf16 operands on the MXU, f32 accumulation; elementwise math in f32.
    z = jnp.dot(x.astype(bf16), w1_ref[...], preferred_element_type=f32)
    z = jnp.maximum(z + b1_ref[...], 0.0)
    y = jnp.dot(z.astype(bf16), w2_ref[...], preferred_element_type=f32)
    y = jnp.maximum(y + b2_ref[...], 0.0)
    y = jnp.dot(y.astype(bf16), w3_ref[...], preferred_element_type=f32)
    y = jnp.maximum(y + b3_ref[...], 0.0)
    r = jnp.dot(y.astype(bf16), w4_ref[...], preferred_element_type=f32)
    z_ref[...] = z + jnp.maximum(r + b4_ref[...], 0.0)


def _head_kernel(z_ref, s_h_ref, t_h_ref, wf_ref, bf_ref, out_ref):
    """hidden BN (precomputed scale/shift) + final layer; lane-padded output."""
    f32 = jnp.float32
    z = z_ref[...] * s_h_ref[...] + t_h_ref[...]
    out = jnp.dot(z.astype(jnp.bfloat16), wf_ref[...], preferred_element_type=f32)
    out_ref[...] = out + bf_ref[...]


def weighted_q_forward(x, params, n_actions, reward_size, *, block_b=256):
    """x: [B, n_obs] float32.  Returns [B, n_actions, reward_size] float32."""
    B, n_obs = x.shape
    H = params["w1"].shape[1]
    out_p = params["wf"].shape[1]          # lane-padded output width
    n_out = n_actions * reward_size
    assert out_p % LANE == 0 and out_p >= n_out

    tb = B if B <= block_b else block_b
    assert B % tb == 0, "batch must be divisible by the batch tile"
    assert tb == B or tb % 8 == 0, "batch tile must be sublane aligned"
    grid = (B // tb,)

    # BatchNorm statistics are over the FULL batch (training-mode semantics),
    # so they are computed outside the batch-tiled kernels (per-tile stats
    # would silently change the math).
    s_in, t_in = _bn_scale_shift(x, params["g_in"], params["b_in"])

    def full(a):  # whole-array block, constant across the batch grid
        return pl.BlockSpec(a.shape, lambda i: (0,) * a.ndim)

    # Small tiles + small weights => far below VMEM limits on every generation
    # (v7x has only 64 MiB physical / 32 MiB default scoped VMEM).
    cparams = pltpu.CompilerParams(
        dimension_semantics=("parallel",),
        vmem_limit_bytes=32 * 1024 * 1024,
    )

    # ---- Kernel A: input BN + 4-layer ReLU MLP with residual -> z [B, H] ----
    body_args = (x, s_in, t_in,
                 params["w1"], params["b1"], params["w2"], params["b2"],
                 params["w3"], params["b3"], params["w4"], params["b4"])
    body_bytes = (x.size * 4 + (s_in.size + t_in.size) * 4
                  + sum(params[k].size * 2 for k in ("w1", "w2", "w3", "w4"))
                  + sum(params[k].size * 4 for k in ("b1", "b2", "b3", "b4"))
                  + B * H * 4)
    z = pl.pallas_call(
        _mlp_body_kernel,
        out_shape=jax.ShapeDtypeStruct((B, H), jnp.float32),
        grid=grid,
        in_specs=[pl.BlockSpec((tb, n_obs), lambda i: (i, 0))]
                 + [full(a) for a in body_args[1:]],
        out_specs=pl.BlockSpec((tb, H), lambda i: (i, 0)),
        compiler_params=cparams,
        cost_estimate=pl.CostEstimate(
            flops=2 * B * (n_obs * H + 3 * H * H),
            transcendentals=0,
            bytes_accessed=body_bytes),
    )(*body_args)

    # Hidden BatchNorm statistics over the full batch of z (tiny XLA reduce).
    s_h, t_h = _bn_scale_shift(z, params["g_h"], params["b_h"])

    # ---- Kernel B: hidden BN + final layer -> lane-dense [B, out_p] ----
    head_args = (z, s_h, t_h, params["wf"], params["bf"])
    head_bytes = (B * H * 4 + (s_h.size + t_h.size) * 4
                  + params["wf"].size * 2 + params["bf"].size * 4
                  + B * out_p * 4)
    out = pl.pallas_call(
        _head_kernel,
        out_shape=jax.ShapeDtypeStruct((B, out_p), jnp.float32),
        grid=grid,
        in_specs=[pl.BlockSpec((tb, H), lambda i: (i, 0))]
                 + [full(a) for a in head_args[1:]],
        out_specs=pl.BlockSpec((tb, out_p), lambda i: (i, 0)),
        compiler_params=cparams,
        cost_estimate=pl.CostEstimate(
            flops=2 * B * H * out_p,
            transcendentals=0,
            bytes_accessed=head_bytes),
    )(*head_args)

    # Drop the lane padding and shape like the PyTorch module's .view().
    return out[:, :n_out].reshape(B, n_actions, reward_size)


def init_params(key, n_obs, hidden, n_actions, reward_size):
    """PyTorch-style Linear init (uniform +/- 1/sqrt(fan_in)).  Weights are
    stored pre-transposed [in, out] in bf16 for the MXU; the final layer is
    lane-padded to a multiple of 128 output features (padded cols/lanes = 0)."""
    n_out = n_actions * reward_size
    out_p = ((n_out + LANE - 1) // LANE) * LANE

    def linear(k, fan_in, fan_out, pad_to=None):
        kw, kb = jax.random.split(k)
        bound = 1.0 / math.sqrt(fan_in)
        w = jax.random.uniform(kw, (fan_in, fan_out), jnp.float32, -bound, bound)
        b = jax.random.uniform(kb, (1, fan_out), jnp.float32, -bound, bound)
        if pad_to is not None and pad_to > fan_out:
            w = jnp.pad(w, ((0, 0), (0, pad_to - fan_out)))
            b = jnp.pad(b, ((0, 0), (0, pad_to - fan_out)))
        return w.astype(jnp.bfloat16), b

    keys = jax.random.split(key, 5)
    w1, b1 = linear(keys[0], n_obs, hidden)
    w2, b2 = linear(keys[1], hidden, hidden)
    w3, b3 = linear(keys[2], hidden, hidden)
    w4, b4 = linear(keys[3], hidden, hidden)
    wf, bf = linear(keys[4], hidden, n_out, pad_to=out_p)

    return {
        "g_in": jnp.ones((1, n_obs), jnp.float32),
        "b_in": jnp.zeros((1, n_obs), jnp.float32),
        "w1": w1, "b1": b1, "w2": w2, "b2": b2,
        "w3": w3, "b3": b3, "w4": w4, "b4": b4,
        "g_h": jnp.ones((1, hidden), jnp.float32),
        "b_h": jnp.zeros((1, hidden), jnp.float32),
        "wf": wf, "bf": bf,
    }


def reference_forward(x, p, n_actions, reward_size, matmul_dtype=jnp.float32):
    """Pure-JAX mirror of the PyTorch forward (training-mode BN).  With
    matmul_dtype=bfloat16 it reproduces the kernel's MXU numerics."""
    n_out = n_actions * reward_size

    def dot(a, w):
        return jnp.dot(a.astype(matmul_dtype), w.astype(matmul_dtype),
                       preferred_element_type=jnp.float32)

    def bn(v, g, b):
        s, t = _bn_scale_shift(v, g, b)
        return v * s + t

    x = bn(x, p["g_in"], p["b_in"])
    z = jax.nn.relu(dot(x, p["w1"]) + p["b1"])
    y = jax.nn.relu(dot(z, p["w2"]) + p["b2"])
    y = jax.nn.relu(dot(y, p["w3"]) + p["b3"])
    z = z + jax.nn.relu(dot(y, p["w4"]) + p["b4"])
    z = bn(z, p["g_h"], p["b_h"])
    out = dot(z, p["wf"]) + p["bf"]
    return out[:, :n_out].reshape(-1, n_actions, reward_size)


# TODO(synk): SmoothL1Loss / SGD optimizer / BN running-stat updates belong to
# the training step, not the forward pass, and are intentionally not kernelized.

if __name__ == "__main__":
    batch = 64            # 2 batch tiles of 32 -> exercises the parallel grid
    n_observations = 16
    hidden = 128          # module default (lane-aligned)
    n_actions = 4
    reward_size = 3       # len(weights) in the PyTorch module

    key = jax.random.PRNGKey(0)
    k_x, k_p = jax.random.split(key)
    x = jax.random.normal(k_x, (batch, n_observations), jnp.float32)
    params = init_params(k_p, n_observations, hidden, n_actions, reward_size)

    fwd = jax.jit(functools.partial(weighted_q_forward,
                                    n_actions=n_actions,
                                    reward_size=reward_size,
                                    block_b=32))
    out = jax.block_until_ready(fwd(x, params))
    assert out.shape == (batch, n_actions, reward_size)

    # Tight check vs. a reference that mirrors the kernel's bf16-MXU math.
    ref_bf16 = reference_forward(x, params, n_actions, reward_size,
                                 matmul_dtype=jnp.bfloat16)
    assert jnp.allclose(out, ref_bf16, atol=1e-3, rtol=1e-3)

    # Loose check vs. full-f32 activation math (PyTorch-style forward).
    ref_f32 = reference_forward(x, params, n_actions, reward_size,
                                matmul_dtype=jnp.float32)
    assert jnp.allclose(out, ref_f32, atol=3e-2, rtol=3e-2)

    print("KERNEL_OK")
</pallas_src>

<mosaic_0001>
module attributes {stable_mosaic.version = 11 : i64} {
  func.func @_mlp_body_kernel(%arg0: i32, %arg1: memref<32x16xf32, #tpu.memory_space<vmem>>, %arg2: memref<1x16xf32, #tpu.memory_space<vmem>>, %arg3: memref<1x16xf32, #tpu.memory_space<vmem>>, %arg4: memref<16x128xbf16, #tpu.memory_space<vmem>>, %arg5: memref<1x128xf32, #tpu.memory_space<vmem>>, %arg6: memref<128x128xbf16, #tpu.memory_space<vmem>>, %arg7: memref<1x128xf32, #tpu.memory_space<vmem>>, %arg8: memref<128x128xbf16, #tpu.memory_space<vmem>>, %arg9: memref<1x128xf32, #tpu.memory_space<vmem>>, %arg10: memref<128x128xbf16, #tpu.memory_space<vmem>>, %arg11: memref<1x128xf32, #tpu.memory_space<vmem>>, %arg12: memref<32x128xf32, #tpu.memory_space<vmem>>) attributes {dimension_semantics = [#tpu.dimension_semantics<parallel>], iteration_bounds = array<i64: 2>, scalar_prefetch = 0 : i64, scratch_operands = 0 : i64, tpu.core_type = #tpu.core_type<tc>, window_params = [{transform_indices = @transform_0, window_bounds = array<i64: 32, 16>}, {pipeline_mode = #tpu.pipeline_mode<synchronous>, transform_indices = @transform_1, window_bounds = array<i64: 1, 16>}, {pipeline_mode = #tpu.pipeline_mode<synchronous>, transform_indices = @transform_2, window_bounds = array<i64: 1, 16>}, {pipeline_mode = #tpu.pipeline_mode<synchronous>, transform_indices = @transform_3, window_bounds = array<i64: 16, 128>}, {pipeline_mode = #tpu.pipeline_mode<synchronous>, transform_indices = @transform_4, window_bounds = array<i64: 1, 128>}, {pipeline_mode = #tpu.pipeline_mode<synchronous>, transform_indices = @transform_5, window_bounds = array<i64: 128, 128>}, {pipeline_mode = #tpu.pipeline_mode<synchronous>, transform_indices = @transform_6, window_bounds = array<i64: 1, 128>}, {pipeline_mode = #tpu.pipeline_mode<synchronous>, transform_indices = @transform_7, window_bounds = array<i64: 128, 128>}, {pipeline_mode = #tpu.pipeline_mode<synchronous>, transform_indices = @transform_8, window_bounds = array<i64: 1, 128>}, {pipeline_mode = #tpu.pipeline_mode<synchronous>, transform_indices = @transform_9, window_bounds = array<i64: 128, 128>}, {pipeline_mode = #tpu.pipeline_mode<synchronous>, transform_indices = @transform_10, window_bounds = array<i64: 1, 128>}, {transform_indices = @transform_11, window_bounds = array<i64: 32, 128>}]} {
    %c0 = arith.constant 0 : index
    %c0_0 = arith.constant 0 : index
    %0 = vector.load %arg1[%c0, %c0_0] : memref<32x16xf32, #tpu.memory_space<vmem>>, vector<32x16xf32>
    %c0_1 = arith.constant 0 : index
    %c0_2 = arith.constant 0 : index
    %1 = vector.load %arg2[%c0_1, %c0_2] : memref<1x16xf32, #tpu.memory_space<vmem>>, vector<1x16xf32>
    %2 = vector.broadcast %1 : vector<1x16xf32> to vector<32x16xf32>
    %3 = arith.mulf %0, %2 : vector<32x16xf32>
    %c0_3 = arith.constant 0 : index
    %c0_4 = arith.constant 0 : index
    %4 = vector.load %arg3[%c0_3, %c0_4] : memref<1x16xf32, #tpu.memory_space<vmem>>, vector<1x16xf32>
    %5 = vector.broadcast %4 : vector<1x16xf32> to vector<32x16xf32>
    %6 = arith.addf %3, %5 : vector<32x16xf32>
    %7 = arith.truncf %6 : vector<32x16xf32> to vector<32x16xbf16>
    %c0_5 = arith.constant 0 : index
    %c0_6 = arith.constant 0 : index
    %8 = vector.load %arg4[%c0_5, %c0_6] : memref<16x128xbf16, #tpu.memory_space<vmem>>, vector<16x128xbf16>
    %cst = arith.constant dense<0.000000e+00> : vector<32x128xf32>
    %9 = tpu.matmul %7, %8, %cst {dimension_numbers = #tpu.dot_dimension_numbers<[1], [0], [0], [1], [0, 0, 1, 1], [], []>} : vector<32x16xbf16>, vector<16x128xbf16>, vector<32x128xf32> -> vector<32x128xf32>
    %c0_7 = arith.constant 0 : index
    %c0_8 = arith.constant 0 : index
    %10 = vector.load %arg5[%c0_7, %c0_8] : memref<1x128xf32, #tpu.memory_space<vmem>>, vector<1x128xf32>
    %11 = vector.broadcast %10 : vector<1x128xf32> to vector<32x128xf32>
    %12 = arith.addf %9, %11 : vector<32x128xf32>
    %cst_9 = arith.constant 0.000000e+00 : f32
    %13 = vector.broadcast %cst_9 : f32 to vector<32x128xf32>
    %14 = arith.maximumf %12, %13 : vector<32x128xf32>
    %15 = arith.truncf %14 : vector<32x128xf32> to vector<32x128xbf16>
    %c0_10 = arith.constant 0 : index
    %c0_11 = arith.constant 0 : index
    %16 = vector.load %arg6[%c0_10, %c0_11] : memref<128x128xbf16, #tpu.memory_space<vmem>>, vector<128x128xbf16>
    %cst_12 = arith.constant dense<0.000000e+00> : vector<32x128xf32>
    %17 = tpu.matmul %15, %16, %cst_12 {dimension_numbers = #tpu.dot_dimension_numbers<[1], [0], [0], [1], [0, 0, 1, 1], [], []>} : vector<32x128xbf16>, vector<128x128xbf16>, vector<32x128xf32> -> vector<32x128xf32>
    %c0_13 = arith.constant 0 : index
    %c0_14 = arith.constant 0 : index
    %18 = vector.load %arg7[%c0_13, %c0_14] : memref<1x128xf32, #tpu.memory_space<vmem>>, vector<1x128xf32>
    %19 = vector.broadcast %18 : vector<1x128xf32> to vector<32x128xf32>
    %20 = arith.addf %17, %19 : vector<32x128xf32>
    %cst_15 = arith.constant 0.000000e+00 : f32
    %21 = vector.broadcast %cst_15 : f32 to vector<32x128xf32>
    %22 = arith.maximumf %20, %21 : vector<32x128xf32>
    %23 = arith.truncf %22 : vector<32x128xf32> to vector<32x128xbf16>
    %c0_16 = arith.constant 0 : index
    %c0_17 = arith.constant 0 : index
    %24 = vector.load %arg8[%c0_16, %c0_17] : memref<128x128xbf16, #tpu.memory_space<vmem>>, vector<128x128xbf16>
    %cst_18 = arith.constant dense<0.000000e+00> : vector<32x128xf32>
    %25 = tpu.matmul %23, %24, %cst_18 {dimension_numbers = #tpu.dot_dimension_numbers<[1], [0], [0], [1], [0, 0, 1, 1], [], []>} : vector<32x128xbf16>, vector<128x128xbf16>, vector<32x128xf32> -> vector<32x128xf32>
    %c0_19 = arith.constant 0 : index
    %c0_20 = arith.constant 0 : index
    %26 = vector.load %arg9[%c0_19, %c0_20] : memref<1x128xf32, #tpu.memory_space<vmem>>, vector<1x128xf32>
    %27 = vector.broadcast %26 : vector<1x128xf32> to vector<32x128xf32>
    %28 = arith.addf %25, %27 : vector<32x128xf32>
    %cst_21 = arith.constant 0.000000e+00 : f32
    %29 = vector.broadcast %cst_21 : f32 to vector<32x128xf32>
    %30 = arith.maximumf %28, %29 : vector<32x128xf32>
    %31 = arith.truncf %30 : vector<32x128xf32> to vector<32x128xbf16>
    %c0_22 = arith.constant 0 : index
    %c0_23 = arith.constant 0 : index
    %32 = vector.load %arg10[%c0_22, %c0_23] : memref<128x128xbf16, #tpu.memory_space<vmem>>, vector<128x128xbf16>
    %cst_24 = arith.constant dense<0.000000e+00> : vector<32x128xf32>
    %33 = tpu.matmul %31, %32, %cst_24 {dimension_numbers = #tpu.dot_dimension_numbers<[1], [0], [0], [1], [0, 0, 1, 1], [], []>} : vector<32x128xbf16>, vector<128x128xbf16>, vector<32x128xf32> -> vector<32x128xf32>
    %c0_25 = arith.constant 0 : index
    %c0_26 = arith.constant 0 : index
    %34 = vector.load %arg11[%c0_25, %c0_26] : memref<1x128xf32, #tpu.memory_space<vmem>>, vector<1x128xf32>
    %35 = vector.broadcast %34 : vector<1x128xf32> to vector<32x128xf32>
    %36 = arith.addf %33, %35 : vector<32x128xf32>
    %cst_27 = arith.constant 0.000000e+00 : f32
    %37 = vector.broadcast %cst_27 : f32 to vector<32x128xf32>
    %38 = arith.maximumf %36, %37 : vector<32x128xf32>
    %39 = arith.addf %14, %38 : vector<32x128xf32>
    %c0_28 = arith.constant 0 : index
    %c0_29 = arith.constant 0 : index
    %40 = vector.load %arg12[%c0_28, %c0_29] : memref<32x128xf32, #tpu.memory_space<vmem>>, vector<32x128xf32>
    tpu.vector_store %arg12[%c0_28, %c0_29], %39 {strides = array<i32>} : memref<32x128xf32, #tpu.memory_space<vmem>>, vector<32x128xf32>,
    return
  }
  func.func @transform_0(%arg0: i32) -> (i32, i32) {
    %c0_i32 = arith.constant 0 : i32
    %c0_i32_0 = arith.constant 0 : i32
    return %arg0, %c0_i32 : i32, i32
  }
  func.func @transform_1(%arg0: i32) -> (i32, i32) {
    %c0_i32 = arith.constant 0 : i32
    %c0_i32_0 = arith.constant 0 : i32
    %c0_i32_1 = arith.constant 0 : i32
    return %c0_i32, %c0_i32_0 : i32, i32
  }
  func.func @transform_2(%arg0: i32) -> (i32, i32) {
    %c0_i32 = arith.constant 0 : i32
    %c0_i32_0 = arith.constant 0 : i32
    %c0_i32_1 = arith.constant 0 : i32
    return %c0_i32, %c0_i32_0 : i32, i32
  }
  func.func @transform_3(%arg0: i32) -> (i32, i32) {
    %c0_i32 = arith.constant 0 : i32
    %c0_i32_0 = arith.constant 0 : i32
    %c0_i32_1 = arith.constant 0 : i32
    return %c0_i32, %c0_i32_0 : i32, i32
  }
  func.func @transform_4(%arg0: i32) -> (i32, i32) {
    %c0_i32 = arith.constant 0 : i32
    %c0_i32_0 = arith.constant 0 : i32
    %c0_i32_1 = arith.constant 0 : i32
    return %c0_i32, %c0_i32_0 : i32, i32
  }
  func.func @transform_5(%arg0: i32) -> (i32, i32) {
    %c0_i32 = arith.constant 0 : i32
    %c0_i32_0 = arith.constant 0 : i32
    %c0_i32_1 = arith.constant 0 : i32
    return %c0_i32, %c0_i32_0 : i32, i32
  }
  func.func @transform_6(%arg0: i32) -> (i32, i32) {
    %c0_i32 = arith.constant 0 : i32
    %c0_i32_0 = arith.constant 0 : i32
    %c0_i32_1 = arith.constant 0 : i32
    return %c0_i32, %c0_i32_0 : i32, i32
  }
  func.func @transform_7(%arg0: i32) -> (i32, i32) {
    %c0_i32 = arith.constant 0 : i32
    %c0_i32_0 = arith.constant 0 : i32
    %c0_i32_1 = arith.constant 0 : i32
    return %c0_i32, %c0_i32_0 : i32, i32
  }
  func.func @transform_8(%arg0: i32) -> (i32, i32) {
    %c0_i32 = arith.constant 0 : i32
    %c0_i32_0 = arith.constant 0 : i32
    %c0_i32_1 = arith.constant 0 : i32
    return %c0_i32, %c0_i32_0 : i32, i32
  }
  func.func @transform_9(%arg0: i32) -> (i32, i32) {
    %c0_i32 = arith.constant 0 : i32
    %c0_i32_0 = arith.constant 0 : i32
    %c0_i32_1 = arith.constant 0 : i32
    return %c0_i32, %c0_i32_0 : i32, i32
  }
  func.func @transform_10(%arg0: i32) -> (i32, i32) {
    %c0_i32 = arith.constant 0 : i32
    %c0_i32_0 = arith.constant 0 : i32
    %c0_i32_1 = arith.constant 0 : i32
    return %c0_i32, %c0_i32_0 : i32, i32
  }
  func.func @transform_11(%arg0: i32) -> (i32, i32) {
    %c0_i32 = arith.constant 0 : i32
    %c0_i32_0 = arith.constant 0 : i32
    return %arg0, %c0_i32 : i32, i32
  }
}

module attributes {stable_mosaic.version = 11 : i64} {
  func.func @_head_kernel(%arg0: i32, %arg1: memref<32x128xf32, #tpu.memory_space<vmem>>, %arg2: memref<1x128xf32, #tpu.memory_space<vmem>>, %arg3: memref<1x128xf32, #tpu.memory_space<vmem>>, %arg4: memref<128x128xbf16, #tpu.memory_space<vmem>>, %arg5: memref<1x128xf32, #tpu.memory_space<vmem>>, %arg6: memref<32x128xf32, #tpu.memory_space<vmem>>) attributes {dimension_semantics = [#tpu.dimension_semantics<parallel>], iteration_bounds = array<i64: 2>, scalar_prefetch = 0 : i64, scratch_operands = 0 : i64, tpu.core_type = #tpu.core_type<tc>, window_params = [{transform_indices = @transform_0, window_bounds = array<i64: 32, 128>}, {pipeline_mode = #tpu.pipeline_mode<synchronous>, transform_indices = @transform_1, window_bounds = array<i64: 1, 128>}, {pipeline_mode = #tpu.pipeline_mode<synchronous>, transform_indices = @transform_2, window_bounds = array<i64: 1, 128>}, {pipeline_mode = #tpu.pipeline_mode<synchronous>, transform_indices = @transform_3, window_bounds = array<i64: 128, 128>}, {pipeline_mode = #tpu.pipeline_mode<synchronous>, transform_indices = @transform_4, window_bounds = array<i64: 1, 128>}, {transform_indices = @transform_5, window_bounds = array<i64: 32, 128>}]} {
    %c0 = arith.constant 0 : index
    %c0_0 = arith.constant 0 : index
    %0 = vector.load %arg1[%c0, %c0_0] : memref<32x128xf32, #tpu.memory_space<vmem>>, vector<32x128xf32>
    %c0_1 = arith.constant 0 : index
    %c0_2 = arith.constant 0 : index
    %1 = vector.load %arg2[%c0_1, %c0_2] : memref<1x128xf32, #tpu.memory_space<vmem>>, vector<1x128xf32>
    %2 = vector.broadcast %1 : vector<1x128xf32> to vector<32x128xf32>
    %3 = arith.mulf %0, %2 : vector<32x128xf32>
    %c0_3 = arith.constant 0 : index
    %c0_4 = arith.constant 0 : index
    %4 = vector.load %arg3[%c0_3, %c0_4] : memref<1x128xf32, #tpu.memory_space<vmem>>, vector<1x128xf32>
    %5 = vector.broadcast %4 : vector<1x128xf32> to vector<32x128xf32>
    %6 = arith.addf %3, %5 : vector<32x128xf32>
    %7 = arith.truncf %6 : vector<32x128xf32> to vector<32x128xbf16>
    %c0_5 = arith.constant 0 : index
    %c0_6 = arith.constant 0 : index
    %8 = vector.load %arg4[%c0_5, %c0_6] : memref<128x128xbf16, #tpu.memory_space<vmem>>, vector<128x128xbf16>
    %cst = arith.constant dense<0.000000e+00> : vector<32x128xf32>
    %9 = tpu.matmul %7, %8, %cst {dimension_numbers = #tpu.dot_dimension_numbers<[1], [0], [0], [1], [0, 0, 1, 1], [], []>} : vector<32x128xbf16>, vector<128x128xbf16>, vector<32x128xf32> -> vector<32x128xf32>
    %c0_7 = arith.constant 0 : index
    %c0_8 = arith.constant 0 : index
    %10 = vector.load %arg5[%c0_7, %c0_8] : memref<1x128xf32, #tpu.memory_space<vmem>>, vector<1x128xf32>
    %11 = vector.broadcast %10 : vector<1x128xf32> to vector<32x128xf32>
    %12 = arith.addf %9, %11 : vector<32x128xf32>
    %c0_9 = arith.constant 0 : index
    %c0_10 = arith.constant 0 : index
    %13 = vector.load %arg6[%c0_9, %c0_10] : memref<32x128xf32, #tpu.memory_space<vmem>>, vector<32x128xf32>
    tpu.vector_store %arg6[%c0_9, %c0_10], %12 {strides = array<i32>} : memref<32x128xf32, #tpu.memory_space<vmem>>, vector<32x128xf32>,
    return
  }
  func.func @transform_0(%arg0: i32) -> (i32, i32) {
    %c0_i32 = arith.constant 0 : i32
    %c0_i32_0 = arith.constant 0 : i32
    return %arg0, %c0_i32 : i32, i32
  }
  func.func @transform_1(%arg0: i32) -> (i32, i32) {
    %c0_i32 = arith.constant 0 : i32
    %c0_i32_0 = arith.constant 0 : i32
    %c0_i32_1 = arith.constant 0 : i32
    return %c0_i32, %c0_i32_0 : i32, i32
  }
  func.func @transform_2(%arg0: i32) -> (i32, i32) {
    %c0_i32 = arith.constant 0 : i32
    %c0_i32_0 = arith.constant 0 : i32
    %c0_i32_1 = arith.constant 0 : i32
    return %c0_i32, %c0_i32_0 : i32, i32
  }
  func.func @transform_3(%arg0: i32) -> (i32, i32) {
    %c0_i32 = arith.constant 0 : i32
    %c0_i32_0 = arith.constant 0 : i32
    %c0_i32_1 = arith.constant 0 : i32
    return %c0_i32, %c0_i32_0 : i32, i32
  }
  func.func @transform_4(%arg0: i32) -> (i32, i32) {
    %c0_i32 = arith.constant 0 : i32
    %c0_i32_0 = arith.constant 0 : i32
    %c0_i32_1 = arith.constant 0 : i32
    return %c0_i32, %c0_i32_0 : i32, i32
  }
  func.func @transform_5(%arg0: i32) -> (i32, i32) {
    %c0_i32 = arith.constant 0 : i32
    %c0_i32_0 = arith.constant 0 : i32
    return %arg0, %c0_i32 : i32, i32
  }
}

</mosaic_0001>

<llo_original>
// kernel: weighted_q_forward.3
$region0: #{weighted_q_forward.3}
  #allocation0 [shape = 'u32[]', space=smem, size = 0x4, offset = 0x4, fixed_abs, tag = 'smem constant byte address 0x4 - core index']
  #allocation1 [shape = 'u32[144,128]{1,0:T(1,128)}', space=vmem, size = 0x12000, scoped, tag = 'internal scratch']
  %s0 = inlined_call_operand.vmem [shape: f32[64,128], index: 0, kind: input, shape index: {}]
  %s1 = inlined_call_operand.vmem [shape: f32[1,128], index: 1, kind: input, shape index: {}]
  %s2 = inlined_call_operand.vmem [shape: f32[1,128], index: 2, kind: input, shape index: {}]
  %s3 = inlined_call_operand.vmem [shape: bf16[128,128], index: 3, kind: input, shape index: {}]
  %s4 = inlined_call_operand.vmem [shape: f32[1,128], index: 4, kind: input, shape index: {}]
  %s5 = inlined_call_operand.vmem [shape: f32[64,128], index: 5, kind: output, shape index: {}]
  %s6 = sld [smem:[#allocation0]]
  $region53: #{weighted_q_forward.3} parent=0
    _
  %s8 = ssub.s32 1, %s6
  %s9 = scalar_select 0, %s8, %s6
  loop: start=0, step=1, limit=4
  $region2: #{weighted_q_forward.3} parent=0 // loop_pre_header
    _
  $region3: #{weighted_q_forward.3} parent=0 // loop_header
    %s11 = sphi 0, %s15
    %p12 = scmp.ge.s32.totalorder %s11, 4
    %s21 = sphi 0, %s23
    %s24 = sphi 0, %s21
    %s25 = sphi 0, %s24
    %s41 = sphi 0, %s25
    %s45 = sphi 0, %s45
    %s47 = sphi 0, %s45
    %s48 = sphi 0, %s47
    %s62 = sphi 0, %s48
    %s66 = sphi 0, %s66
    %s68 = sphi 0, %s66
    %s69 = sphi 0, %s68
    %s83 = sphi 0, %s69
    %s87 = sphi 0, %s87
    %s89 = sphi 0, %s87
    %s90 = sphi 0, %s89
    %s104 = sphi 0, %s90
    %s108 = sphi 0, %s108
    %s110 = sphi 0, %s108
    %s111 = sphi 0, %s110
    %s125 = sphi 0, %s111
    %s131 = sphi 0, %s133
    %s134 = sphi 0, %s131
    %s135 = sphi 0, %s134
    %s151 = sphi 0, %s135
  $region4: #{weighted_q_forward.3} parent=0 // loop_header_branch
    %14 = sbr.rel (%p12) target = $region8
  $region5: #{weighted_q_forward.3} parent=0 // loop_body
    %s16 = ssub.s32 %s11, 1
    %s17 = ssub.s32 %s11, 2
    %s18 = sadd.s32 %s11, 1
    %s19 = ssub.s32 %s11, %s18
    %p20 = scmp.eq.s32.totalorder %s19, 0
    %s22 = sadd.s32 %s21, 1
    %s23 = scalar_select %p20, %s21, %s22
    %p26 = pneg %p20
    %p27 = scmp.eq.s32.totalorder %s11, 1
    %p28 = por %p26, %p27
    %p29 = scmp.ne.s32.totalorder %s21, %s24
    %p30 = scmp.eq.s32.totalorder %s11, 0
    %p31 = por %p29, %p30
    %p32 = scmp.ne.s32.totalorder %s21, %s24
    %p33 = scmp.eq.s32.totalorder %s16, 1
    %p34 = por %p32, %p33
    %p35 = scmp.ne.s32.totalorder %s24, %s25
    %p36 = scmp.eq.s32.totalorder %s16, 0
    %p37 = por %p35, %p36
    %p38 = scmp.ne.s32.totalorder %s24, %s25
    %p39 = scmp.eq.s32.totalorder %s17, 1
    %p40 = por %p38, %p39
    %p42 = scmp.ne.s32.totalorder %s25, %s41
    %p43 = scmp.eq.s32.totalorder %s17, 0
    %p44 = por %p42, %p43
    %s46 = sadd.s32 %s45, 1
    %p49 = scmp.eq.s32.totalorder %s11, 1
    %p50 = scmp.ne.s32.totalorder %s45, %s47
    %p51 = scmp.eq.s32.totalorder %s11, 0
    %p52 = por %p50, %p51
    %p53 = scmp.ne.s32.totalorder %s45, %s47
    %p54 = scmp.eq.s32.totalorder %s16, 1
    %p55 = por %p53, %p54
    %p56 = scmp.ne.s32.totalorder %s47, %s48
    %p57 = scmp.eq.s32.totalorder %s16, 0
    %p58 = por %p56, %p57
    %p59 = scmp.ne.s32.totalorder %s47, %s48
    %p60 = scmp.eq.s32.totalorder %s17, 1
    %p61 = por %p59, %p60
    %p63 = scmp.ne.s32.totalorder %s48, %s62
    %p64 = scmp.eq.s32.totalorder %s17, 0
    %p65 = por %p63, %p64
    %s67 = sadd.s32 %s66, 1
    %p70 = scmp.eq.s32.totalorder %s11, 1
    %p71 = scmp.ne.s32.totalorder %s66, %s68
    %p72 = scmp.eq.s32.totalorder %s11, 0
    %p73 = por %p71, %p72
    %p74 = scmp.ne.s32.totalorder %s66, %s68
    %p75 = scmp.eq.s32.totalorder %s16, 1
    %p76 = por %p74, %p75
    %p77 = scmp.ne.s32.totalorder %s68, %s69
    %p78 = scmp.eq.s32.totalorder %s16, 0
    %p79 = por %p77, %p78
    %p80 = scmp.ne.s32.totalorder %s68, %s69
    %p81 = scmp.eq.s32.totalorder %s17, 1
    %p82 = por %p80, %p81
    %p84 = scmp.ne.s32.totalorder %s69, %s83
    %p85 = scmp.eq.s32.totalorder %s17, 0
    %p86 = por %p84, %p85
    %s88 = sadd.s32 %s87, 1
    %p91 = scmp.eq.s32.totalorder %s11, 1
    %p92 = scmp.ne.s32.totalorder %s87, %s89
    %p93 = scmp.eq.s32.totalorder %s11, 0
    %p94 = por %p92, %p93
    %p95 = scmp.ne.s32.totalorder %s87, %s89
    %p96 = scmp.eq.s32.totalorder %s16, 1
    %p97 = por %p95, %p96
    %p98 = scmp.ne.s32.totalorder %s89, %s90
    %p99 = scmp.eq.s32.totalorder %s16, 0
    %p100 = por %p98, %p99
    %p101 = scmp.ne.s32.totalorder %s89, %s90
    %p102 = scmp.eq.s32.totalorder %s17, 1
    %p103 = por %p101, %p102
    %p105 = scmp.ne.s32.totalorder %s90, %s104
    %p106 = scmp.eq.s32.totalorder %s17, 0
    %p107 = por %p105, %p106
    %s109 = sadd.s32 %s108, 1
    %p112 = scmp.eq.s32.totalorder %s11, 1
    %p113 = scmp.ne.s32.totalorder %s108, %s110
    %p114 = scmp.eq.s32.totalorder %s11, 0
    %p115 = por %p113, %p114
    %p116 = scmp.ne.s32.totalorder %s108, %s110
    %p117 = scmp.eq.s32.totalorder %s16, 1
    %p118 = por %p116, %p117
    %p119 = scmp.ne.s32.totalorder %s110, %s111
    %p120 = scmp.eq.s32.totalorder %s16, 0
    %p121 = por %p119, %p120
    %p122 = scmp.ne.s32.totalorder %s110, %s111
    %p123 = scmp.eq.s32.totalorder %s17, 1
    %p124 = por %p122, %p123
    %p126 = scmp.ne.s32.totalorder %s111, %s125
    %p127 = scmp.eq.s32.totalorder %s17, 0
    %p128 = por %p126, %p127
    %s129 = ssub.s32 %s11, %s18
    %p130 = scmp.eq.s32.totalorder %s129, 0
    %s132 = sadd.s32 %s131, 1
    %s133 = scalar_select %p130, %s131, %s132
    %p136 = pneg %p130
    %p137 = scmp.eq.s32.totalorder %s11, 1
    %p138 = por %p136, %p137
    %p139 = scmp.ne.s32.totalorder %s131, %s134
    %p140 = scmp.eq.s32.totalorder %s11, 0
    %p141 = por %p139, %p140
    %p142 = scmp.ne.s32.totalorder %s131, %s134
    %p143 = scmp.eq.s32.totalorder %s16, 1
    %p144 = por %p142, %p143
    %p145 = scmp.ne.s32.totalorder %s134, %s135
    %p146 = scmp.eq.s32.totalorder %s16, 0
    %p147 = por %p145, %p146
    %p148 = scmp.ne.s32.totalorder %s134, %s135
    %p149 = scmp.eq.s32.totalorder %s17, 1
    %p150 = por %p148, %p149
    %p152 = scmp.ne.s32.totalorder %s135, %s151
    %p153 = scmp.eq.s32.totalorder %s17, 0
    %p154 = por %p152, %p153
    %p155 = scmp.le.s32.totalorder 1, %s11
    %p156 = scmp.lt.s32.totalorder %s11, 3
    %p157 = pnand %p155, %p156
    %p158 = pneg %p157
    // Predicated region
    $region9: #{weighted_q_forward.3} parent=5 // pred_check
      _
    $region10: #{weighted_q_forward.3} parent=5 // pred_check_branch
      %160 = sbr.rel (%p157) target = $region12
    $region11: #{weighted_q_forward.3} parent=5 // pred_region
      %s161 = ssub.s32 %s11, 1
      // Predicated region
      $region13: #{weighted_q_forward.3} parent=11 // pred_check
        %p162 = pneg %p58
      $region14: #{weighted_q_forward.3} parent=11 // pred_check_branch
        %164 = sbr.rel (%p162) target = $region16
      $region15: #{weighted_q_forward.3} parent=11 // pred_region
        _
      $region16: #{weighted_q_forward.3} parent=11 // pred_fallthru
        _
      // Predicated region
      $region17: #{weighted_q_forward.3} parent=11 // pred_check
        %p165 = pneg %p79
      $region18: #{weighted_q_forward.3} parent=11 // pred_check_branch
        %167 = sbr.rel (%p165) target = $region20
      $region19: #{weighted_q_forward.3} parent=11 // pred_region
        _
      $region20: #{weighted_q_forward.3} parent=11 // pred_fallthru
        _
      // Predicated region
      $region21: #{weighted_q_forward.3} parent=11 // pred_check
        %p168 = pneg %p100
      $region22: #{weighted_q_forward.3} parent=11 // pred_check_branch
        %170 = sbr.rel (%p168) target = $region24
      $region23: #{weighted_q_forward.3} parent=11 // pred_region
        _
      $region24: #{weighted_q_forward.3} parent=11 // pred_fallthru
        _
      // Predicated region
      $region25: #{weighted_q_forward.3} parent=11 // pred_check
        %p171 = pneg %p121
      $region26: #{weighted_q_forward.3} parent=11 // pred_check_branch
        %173 = sbr.rel (%p171) target = $region28
      $region27: #{weighted_q_forward.3} parent=11 // pred_region
        _
      $region28: #{weighted_q_forward.3} parent=11 // pred_fallthru
        _
    $region12: #{weighted_q_forward.3} parent=5 // pred_fallthru
      _
    %p174 = scmp.lt.s32.totalorder %s11, 2
    // Predicated region
    $region29: #{weighted_q_forward.3} parent=5 // pred_check
      %p175 = pneg %p174
    $region30: #{weighted_q_forward.3} parent=5 // pred_check_branch
      %177 = sbr.rel (%p175) target = $region32
    $region31: #{weighted_q_forward.3} parent=5 // pred_region
      // Predicated region
      $region33: #{weighted_q_forward.3} parent=31 // pred_check
        %p178 = pneg %p31
      $region34: #{weighted_q_forward.3} parent=31 // pred_check_branch
        %180 = sbr.rel (%p178) target = $region36
      $region35: #{weighted_q_forward.3} parent=31 // pred_region
        %s181 = smul.u32 4, %s11
        %p182 = scmp.lt.s32.totalorder %s181, 7
        %s183 = scalar_select %p182, %s181, 7
        %s184 = smul.addr %s183, 8
        %s185 = scalar_lea.vmem %s0, %s184
        %s186 = smul.u32 4, %s11
      $region36: #{weighted_q_forward.3} parent=31 // pred_fallthru
        _
    $region32: #{weighted_q_forward.3} parent=5 // pred_fallthru
      _
    %p187 = scmp.le.s32.totalorder 1, %s11
    %p188 = scmp.lt.s32.totalorder %s11, 3
    %p189 = pnand %p187, %p188
    %p190 = pneg %p189
    // Predicated region
    $region37: #{weighted_q_forward.3} parent=5 // pred_check
      _
    $region38: #{weighted_q_forward.3} parent=5 // pred_check_branch
      %192 = sbr.rel (%p189) target = $region40
    $region39: #{weighted_q_forward.3} parent=5 // pred_region
      %s193 = ssub.s32 %s11, 1
      %s194 = smul.u32 4, %s16
      %p195 = scmp.lt.s32.totalorder %s194, 7
      %s196 = scalar_select %p195, %s194, 7
      %s197 = smul.addr %s196, 8
      %s198 = scalar_lea.vmem %s0, %s197
      %p199 = pneg %p37
      %p200 = pneg %p34
      %p201 = pneg %p58
      %p202 = pneg %p55
      %p203 = pneg %p79
      %p204 = pneg %p76
      %p205 = pneg %p100
      %p206 = pneg %p97
      %p207 = pneg %p121
      %p208 = pneg %p118
      %p209 = pneg %p147
      %p210 = pneg %p144
      %s211 = smul.u32 4, %s16
      %p212 = scmp.lt.s32.totalorder %s211, 7
      %s213 = scalar_select %p212, %s211, 7
      %s214 = smul.addr %s213, 8
      %s215 = scalar_lea.vmem %s5, %s214
      %s216 = smul.u32 4, %s16
      %p217 = scmp.lt.s32.totalorder %s216, 7
      %s218 = scalar_select %p217, %s216, 7
      %s219 = smul.addr %s218, 8
      %s220 = scalar_lea.vmem %s0, %s219
      %s221 = smul.u32 4, %s16
      %s222 = smul.u32 4, %s16
      %p223 = scmp.lt.s32.totalorder %s222, 7
      %s224 = scalar_select %p223, %s222, 7
      %s225 = smul.addr %s224, 8
      %s226 = scalar_lea.vmem %s5, %s225
      %s227 = smul.u32 4, %s16
      %v229 = vld [vmem:[%s220] sm:$0xff]
      %v230 = vld [vmem:[%s220 + $0x8] sm:$0xff]
      %v231 = vld [vmem:[%s220 + $0x10] sm:$0xff]
      %v232 = vld [vmem:[%s220 + $0x18] sm:$0xff]
      %v233 = vld [vmem:[%s1] sm:$0x1]
      %v235 = vlaneseq
      %v236 = vshrl.u32 %v235, 7
      %v237 = vsub.s32 0, %v236
      %v238 = vrot.slane %v233, %v237
      %v240 = vmul.f32 %v229, %v238
      %v241 = vmul.f32 %v230, %v238
      %v242 = vmul.f32 %v231, %v238
      %v243 = vmul.f32 %v232, %v238
      %v244 = vld [vmem:[%s2] sm:$0x1]
      %v246 = vlaneseq
      %v247 = vshrl.u32 %v246, 7
      %v248 = vsub.s32 0, %v247
      %v249 = vrot.slane %v244, %v248
      %v251 = vadd.f32 %v240, %v249
      %v252 = vadd.f32 %v241, %v249
      %v253 = vadd.f32 %v242, %v249
      %v254 = vadd.f32 %v243, %v249
      %v255 = vpack.c.bf16 %v252, %v251
      %v256 = vpack.c.bf16 %v254, %v253
      %v257 = vld [vmem:[%s3] sm:$0xf]
      %v258 = vld [vmem:[%s3 + $0x4] sm:$0xf]
      %v259 = vld [vmem:[%s3 + $0x8] sm:$0xf]
      %v260 = vld [vmem:[%s3 + $0xc] sm:$0xf]
      %v261 = vld [vmem:[%s3 + $0x10] sm:$0xf]
      %v262 = vld [vmem:[%s3 + $0x14] sm:$0xf]
      %v263 = vld [vmem:[%s3 + $0x18] sm:$0xf]
      %v264 = vld [vmem:[%s3 + $0x1c] sm:$0xf]
      %v265 = vld [vmem:[%s3 + $0x20] sm:$0xf]
      %v266 = vld [vmem:[%s3 + $0x24] sm:$0xf]
      %v267 = vld [vmem:[%s3 + $0x28] sm:$0xf]
      %v268 = vld [vmem:[%s3 + $0x2c] sm:$0xf]
      %v269 = vld [vmem:[%s3 + $0x30] sm:$0xf]
      %v270 = vld [vmem:[%s3 + $0x34] sm:$0xf]
      %v271 = vld [vmem:[%s3 + $0x38] sm:$0xf]
      %v272 = vld [vmem:[%s3 + $0x3c] sm:$0xf]
      %v273 = vld [vmem:[%s4] sm:$0x1]
      %v275 = vlaneseq
      %v276 = vshrl.u32 %v275, 7
      %v277 = vsub.s32 0, %v276
      %v278 = vrot.slane %v273, %v277
      %v296 = vunpack.c.l.b16 %v257
      %v297 = vunpack.c.l.b16 %v258
      %v298 = vunpack.c.l.b16 %v259
      %v299 = vunpack.c.l.b16 %v260
      %v300 = vunpack.c.l.b16 %v261
      %v301 = vunpack.c.l.b16 %v262
      %v302 = vunpack.c.l.b16 %v263
      %v303 = vunpack.c.l.b16 %v264
      %v304 = vunpack.c.l.b16 %v265
      %v305 = vunpack.c.l.b16 %v266
      %v306 = vunpack.c.l.b16 %v267
      %v307 = vunpack.c.l.b16 %v268
      %v308 = vunpack.c.l.b16 %v269
      %v309 = vunpack.c.l.b16 %v270
      %v310 = vunpack.c.l.b16 %v271
      %v311 = vunpack.c.l.b16 %v272
      %v312 = vpack.c.b16 %v297, %v296
      %v313 = vpack.c.b16 %v299, %v298
      %v314 = vpack.c.b16 %v301, %v300
      %v315 = vpack.c.b16 %v303, %v302
      %v316 = vpack.c.b16 %v305, %v304
      %v317 = vpack.c.b16 %v307, %v306
      %v318 = vpack.c.b16 %v309, %v308
      %v319 = vpack.c.b16 %v311, %v310
      %328 = vmatprep.subr.bf16.mxu0 0
      %329 = vmatpush1.bf16.msra.mxu0 %v312
      %330 = vmatprep.subr.bf16.mxu0 0
      %331 = vmatpush1.bf16.msra.mxu0 %v313
      %332 = vmatprep.subr.bf16.mxu0 0
      %333 = vmatpush1.bf16.msra.mxu0 %v314
      %334 = vmatprep.subr.bf16.mxu0 0
      %335 = vmatpush1.bf16.msra.mxu0 %v315
      %336 = vmatprep.subr.bf16.mxu0 0
      %337 = vmatpush1.bf16.msra.mxu0 %v316
      %338 = vmatprep.subr.bf16.mxu0 0
      %339 = vmatpush1.bf16.msra.mxu0 %v317
      %340 = vmatprep.subr.bf16.mxu0 0
      %341 = vmatpush1.bf16.msra.mxu0 %v318
      %342 = vmatprep.subr.bf16.mxu0 0
      %343 = vmatpush1.bf16.msra.mxu0 %v319
      %344 = vmatprep.subr.bf16.mxu0 0
      %345 = vmatpush1.bf16.msra.mxu0 0
      %346 = vmatprep.subr.bf16.mxu0 0
      %347 = vmatpush1.bf16.msra.mxu0 0
      %348 = vmatprep.subr.bf16.mxu0 0
      %349 = vmatpush1.bf16.msra.mxu0 0
      %350 = vmatprep.subr.bf16.mxu0 0
      %351 = vmatpush1.bf16.msra.mxu0 0
      %352 = vmatprep.subr.bf16.mxu0 0
      %353 = vmatpush1.bf16.msra.mxu0 0
      %354 = vmatprep.subr.bf16.mxu0 0
      %355 = vmatpush1.bf16.msra.mxu0 0
      %356 = vmatprep.subr.bf16.mxu0 0
      %357 = vmatpush1.bf16.msra.mxu0 0
      %358 = vmatprep.subr.bf16.mxu0 0
      %359 = vmatpush1.bf16.msra.mxu0 0
      %360 = vmatprep.mubr.bf16.mxu0 0
      %361 = vmatmul.mubr.bf16.gmra.mrb[0].mxu0 %v255
      %v362 = vpop.f32.mrb[0].mxu0
      %v363 = vadd.f32 %v278, %v362
      %v364 = vpop.f32.mrb[0].mxu0
      %v365 = vpop.f32.mrb[0].mxu0
      %v366 = vadd.f32 %v278, %v365
      %v367 = vpop.f32.mrb[0].mxu0
      %368 = vmatprep.mubr.bf16.mxu0 0
      %369 = vmatmul.mubr.bf16.gmra.mrb[0].mxu0 %v256
      %v370 = vpop.f32.mrb[0].mxu0
      %v371 = vadd.f32 %v278, %v370
      %v372 = vpop.f32.mrb[0].mxu0
      %v373 = vpop.f32.mrb[0].mxu0
      %v374 = vadd.f32 %v278, %v373
      %v375 = vpop.f32.mrb[0].mxu0
      %376 = vdwg.mxu0
      %377 = vst [vmem:[%s226] sm:$0xff] %v363
      %378 = vst [vmem:[%s226 + $0x8] sm:$0xff] %v366
      %379 = vst [vmem:[%s226 + $0x10] sm:$0xff] %v371
      %380 = vst [vmem:[%s226 + $0x18] sm:$0xff] %v374
      %s381 = smul.u32 4, %s16
      %p382 = scmp.lt.s32.totalorder %s381, 7
      %s383 = scalar_select %p382, %s381, 7
      %s384 = smul.addr %s383, 8
      %s385 = scalar_lea.vmem %s5, %s384
      // Predicated region
      $region41: #{weighted_q_forward.3} parent=39 // pred_check
        %p386 = pneg %p144
      $region42: #{weighted_q_forward.3} parent=39 // pred_check_branch
        %388 = sbr.rel (%p386) target = $region44
      $region43: #{weighted_q_forward.3} parent=39 // pred_region
        %s389 = smul.u32 4, %s16
      $region44: #{weighted_q_forward.3} parent=39 // pred_fallthru
        _
    $region40: #{weighted_q_forward.3} parent=5 // pred_fallthru
      _
    %p390 = scmp.le.s32.totalorder 2, %s11
    // Predicated region
    $region45: #{weighted_q_forward.3} parent=5 // pred_check
      %p391 = pneg %p390
    $region46: #{weighted_q_forward.3} parent=5 // pred_check_branch
      %393 = sbr.rel (%p391) target = $region48
    $region47: #{weighted_q_forward.3} parent=5 // pred_region
      %s394 = ssub.s32 %s11, 2
      // Predicated region
      $region49: #{weighted_q_forward.3} parent=47 // pred_check
        %p395 = pneg %p150
      $region50: #{weighted_q_forward.3} parent=47 // pred_check_branch
        %397 = sbr.rel (%p395) target = $region52
      $region51: #{weighted_q_forward.3} parent=47 // pred_region
        %s398 = smul.u32 4, %s17
        %p399 = scmp.lt.s32.totalorder %s398, 7
        %s400 = scalar_select %p399, %s398, 7
        %s401 = smul.addr %s400, 8
        %s402 = scalar_lea.vmem %s5, %s401
      $region52: #{weighted_q_forward.3} parent=47 // pred_fallthru
        _
    $region48: #{weighted_q_forward.3} parent=5 // pred_fallthru
      _
  $region6: #{weighted_q_forward.3} parent=0 // loop_footer
    %s15 = sadd.s32 1, %s11
  $region7: #{weighted_q_forward.3} parent=0 // loop_footer_branch
    %10 = sbr.rel target = $region3
  $region8: #{weighted_q_forward.3} parent=0 // loop_exit
    _

// kernel: weighted_q_forward.2
$region0: #{weighted_q_forward.2}
  #allocation0 [shape = 'u32[]', space=smem, size = 0x4, offset = 0x4, fixed_abs, tag = 'smem constant byte address 0x4 - core index']
  #allocation1 [shape = 'u32[144,128]{1,0:T(1,128)}', space=vmem, size = 0x12000, scoped, tag = 'internal scratch']
  %s0 = inlined_call_operand.vmem [shape: f32[64,16], index: 0, kind: input, shape index: {}]
  %s1 = inlined_call_operand.vmem [shape: f32[1,16], index: 1, kind: input, shape index: {}]
  %s2 = inlined_call_operand.vmem [shape: f32[1,16], index: 2, kind: input, shape index: {}]
  %s3 = inlined_call_operand.vmem [shape: bf16[16,128], index: 3, kind: input, shape index: {}]
  %s4 = inlined_call_operand.vmem [shape: f32[1,128], index: 4, kind: input, shape index: {}]
  %s5 = inlined_call_operand.vmem [shape: bf16[128,128], index: 5, kind: input, shape index: {}]
  %s6 = inlined_call_operand.hbm [shape: f32[1,128], index: 6, kind: input, shape index: {}]
  %s7 = inlined_call_operand.vmem [shape: bf16[128,128], index: 7, kind: input, shape index: {}]
  %s8 = inlined_call_operand.hbm [shape: f32[1,128], index: 8, kind: input, shape index: {}]
  %s9 = inlined_call_operand.hbm [shape: bf16[128,128], index: 9, kind: input, shape index: {}]
  %s10 = inlined_call_operand.hbm [shape: f32[1,128], index: 10, kind: input, shape index: {}]
  %s11 = inlined_call_operand.vmem [shape: f32[64,128], index: 11, kind: output, shape index: {}]
  %s12 = sld [smem:[#allocation0]]
  $region93: #{weighted_q_forward.2} parent=0
    _
  %s14 = ssub.s32 1, %s12
  %s15 = scalar_select 0, %s14, %s12
  $region1: #{weighted_q_forward.2} parent=0
    #allocation2 [shape = 'u8[512]{0}', space=vmem, size = 0x400, scoped, tag = 'input window, operand 6, single buffered']
    #allocation3 [shape = 's32[2]{0}', space=sflag, size = 0x8, scoped, tag = 'scoped memory for weighted_q_forward.2']
    #allocation4 [shape = 'u8[512]{0}', space=vmem, size = 0x400, scoped, tag = 'input window, operand 8, single buffered']
    #allocation5 [shape = 's32[1]{0}', space=sflag, size = 0x4, scoped, tag = 'scoped memory for weighted_q_forward.2']
    #allocation6 [shape = 'u8[32768]{0}', space=vmem, size = 0x8000, scoped, tag = 'input window, operand 9, single buffered']
    #allocation7 [shape = 'u8[512]{0}', space=vmem, size = 0x400, scoped, tag = 'input window, operand 10, single buffered']
    #allocation8 [shape = 's32[1]{0}', space=sflag, size = 0x4, scoped, tag = 'scoped memory for weighted_q_forward.2']
    %16 = vsyncpa [#allocation3], 0
    %17 = vsyncpa [#allocation5], 0
    %18 = vsyncpa [#allocation8], 0
    loop: start=0, step=1, limit=4
    $region2: #{weighted_q_forward.2} parent=1 // loop_pre_header
      _
    $region3: #{weighted_q_forward.2} parent=1 // loop_header
      %s20 = sphi 0, %s24
      %p21 = scmp.ge.s32.totalorder %s20, 4
      %s30 = sphi 0, %s32
      %s33 = sphi 0, %s30
      %s34 = sphi 0, %s33
      %s50 = sphi 0, %s34
      %s54 = sphi 0, %s54
      %s56 = sphi 0, %s54
      %s57 = sphi 0, %s56
      %s71 = sphi 0, %s57
      %s75 = sphi 0, %s75
      %s77 = sphi 0, %s75
      %s78 = sphi 0, %s77
      %s92 = sphi 0, %s78
      %s96 = sphi 0, %s96
      %s98 = sphi 0, %s96
      %s99 = sphi 0, %s98
      %s113 = sphi 0, %s99
      %s117 = sphi 0, %s117
      %s119 = sphi 0, %s117
      %s120 = sphi 0, %s119
      %s134 = sphi 0, %s120
      %s138 = sphi 0, %s138
      %s140 = sphi 0, %s138
      %s141 = sphi 0, %s140
      %s155 = sphi 0, %s141
      %s159 = sphi 0, %s159
      %s161 = sphi 0, %s159
      %s162 = sphi 0, %s161
      %s176 = sphi 0, %s162
      %s180 = sphi 0, %s180
      %s182 = sphi 0, %s180
      %s183 = sphi 0, %s182
      %s197 = sphi 0, %s183
      %s201 = sphi 0, %s201
      %s203 = sphi 0, %s201
      %s204 = sphi 0, %s203
      %s218 = sphi 0, %s204
      %s222 = sphi 0, %s222
      %s224 = sphi 0, %s222
      %s225 = sphi 0, %s224
      %s239 = sphi 0, %s225
      %s243 = sphi 0, %s243
      %s245 = sphi 0, %s243
      %s246 = sphi 0, %s245
      %s260 = sphi 0, %s246
      %s266 = sphi 0, %s268
      %s269 = sphi 0, %s266
      %s270 = sphi 0, %s269
      %s286 = sphi 0, %s270
    $region4: #{weighted_q_forward.2} parent=1 // loop_header_branch
      %23 = sbr.rel (%p21) target = $region8
    $region5: #{weighted_q_forward.2} parent=1 // loop_body
      %s25 = ssub.s32 %s20, 1
      %s26 = ssub.s32 %s20, 2
      %s27 = sadd.s32 %s20, 1
      %s28 = ssub.s32 %s20, %s27
      %p29 = scmp.eq.s32.totalorder %s28, 0
      %s31 = sadd.s32 %s30, 1
      %s32 = scalar_select %p29, %s30, %s31
      %p35 = pneg %p29
      %p36 = scmp.eq.s32.totalorder %s20, 1
      %p37 = por %p35, %p36
      %p38 = scmp.ne.s32.totalorder %s30, %s33
      %p39 = scmp.eq.s32.totalorder %s20, 0
      %p40 = por %p38, %p39
      %p41 = scmp.ne.s32.totalorder %s30, %s33
      %p42 = scmp.eq.s32.totalorder %s25, 1
      %p43 = por %p41, %p42
      %p44 = scmp.ne.s32.totalorder %s33, %s34
      %p45 = scmp.eq.s32.totalorder %s25, 0
      %p46 = por %p44, %p45
      %p47 = scmp.ne.s32.totalorder %s33, %s34
      %p48 = scmp.eq.s32.totalorder %s26, 1
      %p49 = por %p47, %p48
      %p51 = scmp.ne.s32.totalorder %s34, %s50
      %p52 = scmp.eq.s32.totalorder %s26, 0
      %p53 = por %p51, %p52
      %s55 = sadd.s32 %s54, 1
      %p58 = scmp.eq.s32.totalorder %s20, 1
      %p59 = scmp.ne.s32.totalorder %s54, %s56
      %p60 = scmp.eq.s32.totalorder %s20, 0
      %p61 = por %p59, %p60
      %p62 = scmp.ne.s32.totalorder %s54, %s56
      %p63 = scmp.eq.s32.totalorder %s25, 1
      %p64 = por %p62, %p63
      %p65 = scmp.ne.s32.totalorder %s56, %s57
      %p66 = scmp.eq.s32.totalorder %s25, 0
      %p67 = por %p65, %p66
      %p68 = scmp.ne.s32.totalorder %s56, %s57
      %p69 = scmp.eq.s32.totalorder %s26, 1
      %p70 = por %p68, %p69
      %p72 = scmp.ne.s32.totalorder %s57, %s71
      %p73 = scmp.eq.s32.totalorder %s26, 0
      %p74 = por %p72, %p73
      %s76 = sadd.s32 %s75, 1
      %p79 = scmp.eq.s32.totalorder %s20, 1
      %p80 = scmp.ne.s32.totalorder %s75, %s77
      %p81 = scmp.eq.s32.totalorder %s20, 0
      %p82 = por %p80, %p81
      %p83 = scmp.ne.s32.totalorder %s75, %s77
      %p84 = scmp.eq.s32.totalorder %s25, 1
      %p85 = por %p83, %p84
      %p86 = scmp.ne.s32.totalorder %s77, %s78
      %p87 = scmp.eq.s32.totalorder %s25, 0
      %p88 = por %p86, %p87
      %p89 = scmp.ne.s32.totalorder %s77, %s78
      %p90 = scmp.eq.s32.totalorder %s26, 1
      %p91 = por %p89, %p90
      %p93 = scmp.ne.s32.totalorder %s78, %s92
      %p94 = scmp.eq.s32.totalorder %s26, 0
      %p95 = por %p93, %p94
      %s97 = sadd.s32 %s96, 1
      %p100 = scmp.eq.s32.totalorder %s20, 1
      %p101 = scmp.ne.s32.totalorder %s96, %s98
      %p102 = scmp.eq.s32.totalorder %s20, 0
      %p103 = por %p101, %p102
      %p104 = scmp.ne.s32.totalorder %s96, %s98
      %p105 = scmp.eq.s32.totalorder %s25, 1
      %p106 = por %p104, %p105
      %p107 = scmp.ne.s32.totalorder %s98, %s99
      %p108 = scmp.eq.s32.totalorder %s25, 0
      %p109 = por %p107, %p108
      %p110 = scmp.ne.s32.totalorder %s98, %s99
      %p111 = scmp.eq.s32.totalorder %s26, 1
      %p112 = por %p110, %p111
      %p114 = scmp.ne.s32.totalorder %s99, %s113
      %p115 = scmp.eq.s32.totalorder %s26, 0
      %p116 = por %p114, %p115
      %s118 = sadd.s32 %s117, 1
      %p121 = scmp.eq.s32.totalorder %s20, 1
      %p122 = scmp.ne.s32.totalorder %s117, %s119
      %p123 = scmp.eq.s32.totalorder %s20, 0
      %p124 = por %p122, %p123
      %p125 = scmp.ne.s32.totalorder %s117, %s119
      %p126 = scmp.eq.s32.totalorder %s25, 1
      %p127 = por %p125, %p126
      %p128 = scmp.ne.s32.totalorder %s119, %s120
      %p129 = scmp.eq.s32.totalorder %s25, 0
      %p130 = por %p128, %p129
      %p131 = scmp.ne.s32.totalorder %s119, %s120
      %p132 = scmp.eq.s32.totalorder %s26, 1
      %p133 = por %p131, %p132
      %p135 = scmp.ne.s32.totalorder %s120, %s134
      %p136 = scmp.eq.s32.totalorder %s26, 0
      %p137 = por %p135, %p136
      %s139 = sadd.s32 %s138, 1
      %p142 = scmp.eq.s32.totalorder %s20, 1
      %p143 = scmp.ne.s32.totalorder %s138, %s140
      %p144 = scmp.eq.s32.totalorder %s20, 0
      %p145 = por %p143, %p144
      %p146 = scmp.ne.s32.totalorder %s138, %s140
      %p147 = scmp.eq.s32.totalorder %s25, 1
      %p148 = por %p146, %p147
      %p149 = scmp.ne.s32.totalorder %s140, %s141
      %p150 = scmp.eq.s32.totalorder %s25, 0
      %p151 = por %p149, %p150
      %p152 = scmp.ne.s32.totalorder %s140, %s141
      %p153 = scmp.eq.s32.totalorder %s26, 1
      %p154 = por %p152, %p153
      %p156 = scmp.ne.s32.totalorder %s141, %s155
      %p157 = scmp.eq.s32.totalorder %s26, 0
      %p158 = por %p156, %p157
      %s160 = sadd.s32 %s159, 1
      %p163 = scmp.eq.s32.totalorder %s20, 1
      %p164 = scmp.ne.s32.totalorder %s159, %s161
      %p165 = scmp.eq.s32.totalorder %s20, 0
      %p166 = por %p164, %p165
      %p167 = scmp.ne.s32.totalorder %s159, %s161
      %p168 = scmp.eq.s32.totalorder %s25, 1
      %p169 = por %p167, %p168
      %p170 = scmp.ne.s32.totalorder %s161, %s162
      %p171 = scmp.eq.s32.totalorder %s25, 0
      %p172 = por %p170, %p171
      %p173 = scmp.ne.s32.totalorder %s161, %s162
      %p174 = scmp.eq.s32.totalorder %s26, 1
      %p175 = por %p173, %p174
      %p177 = scmp.ne.s32.totalorder %s162, %s176
      %p178 = scmp.eq.s32.totalorder %s26, 0
      %p179 = por %p177, %p178
      %s181 = sadd.s32 %s180, 1
      %p184 = scmp.eq.s32.totalorder %s20, 1
      %p185 = scmp.ne.s32.totalorder %s180, %s182
      %p186 = scmp.eq.s32.totalorder %s20, 0
      %p187 = por %p185, %p186
      %p188 = scmp.ne.s32.totalorder %s180, %s182
      %p189 = scmp.eq.s32.totalorder %s25, 1
      %p190 = por %p188, %p189
      %p191 = scmp.ne.s32.totalorder %s182, %s183
      %p192 = scmp.eq.s32.totalorder %s25, 0
      %p193 = por %p191, %p192
      %p194 = scmp.ne.s32.totalorder %s182, %s183
      %p195 = scmp.eq.s32.totalorder %s26, 1
      %p196 = por %p194, %p195
      %p198 = scmp.ne.s32.totalorder %s183, %s197
      %p199 = scmp.eq.s32.totalorder %s26, 0
      %p200 = por %p198, %p199
      %s202 = sadd.s32 %s201, 1
      %p205 = scmp.eq.s32.totalorder %s20, 1
      %p206 = scmp.ne.s32.totalorder %s201, %s203
      %p207 = scmp.eq.s32.totalorder %s20, 0
      %p208 = por %p206, %p207
      %p209 = scmp.ne.s32.totalorder %s201, %s203
      %p210 = scmp.eq.s32.totalorder %s25, 1
      %p211 = por %p209, %p210
      %p212 = scmp.ne.s32.totalorder %s203, %s204
      %p213 = scmp.eq.s32.totalorder %s25, 0
      %p214 = por %p212, %p213
      %p215 = scmp.ne.s32.totalorder %s203, %s204
      %p216 = scmp.eq.s32.totalorder %s26, 1
      %p217 = por %p215, %p216
      %p219 = scmp.ne.s32.totalorder %s204, %s218
      %p220 = scmp.eq.s32.totalorder %s26, 0
      %p221 = por %p219, %p220
      %s223 = sadd.s32 %s222, 1
      %p226 = scmp.eq.s32.totalorder %s20, 1
      %p227 = scmp.ne.s32.totalorder %s222, %s224
      %p228 = scmp.eq.s32.totalorder %s20, 0
      %p229 = por %p227, %p228
      %p230 = scmp.ne.s32.totalorder %s222, %s224
      %p231 = scmp.eq.s32.totalorder %s25, 1
      %p232 = por %p230, %p231
      %p233 = scmp.ne.s32.totalorder %s224, %s225
      %p234 = scmp.eq.s32.totalorder %s25, 0
      %p235 = por %p233, %p234
      %p236 = scmp.ne.s32.totalorder %s224, %s225
      %p237 = scmp.eq.s32.totalorder %s26, 1
      %p238 = por %p236, %p237
      %p240 = scmp.ne.s32.totalorder %s225, %s239
      %p241 = scmp.eq.s32.totalorder %s26, 0
      %p242 = por %p240, %p241
      %s244 = sadd.s32 %s243, 1
      %p247 = scmp.eq.s32.totalorder %s20, 1
      %p248 = scmp.ne.s32.totalorder %s243, %s245
      %p249 = scmp.eq.s32.totalorder %s20, 0
      %p250 = por %p248, %p249
      %p251 = scmp.ne.s32.totalorder %s243, %s245
      %p252 = scmp.eq.s32.totalorder %s25, 1
      %p253 = por %p251, %p252
      %p254 = scmp.ne.s32.totalorder %s245, %s246
      %p255 = scmp.eq.s32.totalorder %s25, 0
      %p256 = por %p254, %p255
      %p257 = scmp.ne.s32.totalorder %s245, %s246
      %p258 = scmp.eq.s32.totalorder %s26, 1
      %p259 = por %p257, %p258
      %p261 = scmp.ne.s32.totalorder %s246, %s260
      %p262 = scmp.eq.s32.totalorder %s26, 0
      %p263 = por %p261, %p262
      %s264 = ssub.s32 %s20, %s27
      %p265 = scmp.eq.s32.totalorder %s264, 0
      %s267 = sadd.s32 %s266, 1
      %s268 = scalar_select %p265, %s266, %s267
      %p271 = pneg %p265
      %p272 = scmp.eq.s32.totalorder %s20, 1
      %p273 = por %p271, %p272
      %p274 = scmp.ne.s32.totalorder %s266, %s269
      %p275 = scmp.eq.s32.totalorder %s20, 0
      %p276 = por %p274, %p275
      %p277 = scmp.ne.s32.totalorder %s266, %s269
      %p278 = scmp.eq.s32.totalorder %s25, 1
      %p279 = por %p277, %p278
      %p280 = scmp.ne.s32.totalorder %s269, %s270
      %p281 = scmp.eq.s32.totalorder %s25, 0
      %p282 = por %p280, %p281
      %p283 = scmp.ne.s32.totalorder %s269, %s270
      %p284 = scmp.eq.s32.totalorder %s26, 1
      %p285 = por %p283, %p284
      %p287 = scmp.ne.s32.totalorder %s270, %s286
      %p288 = scmp.eq.s32.totalorder %s26, 0
      %p289 = por %p287, %p288
      %p290 = scmp.le.s32.totalorder 1, %s20
      %p291 = scmp.lt.s32.totalorder %s20, 3
      %p292 = pnand %p290, %p291
      %p293 = pneg %p292
      // Predicated region
      $region9: #{weighted_q_forward.2} parent=5 // pred_check
        _
      $region10: #{weighted_q_forward.2} parent=5 // pred_check_branch
        %295 = sbr.rel (%p292) target = $region12
      $region11: #{weighted_q_forward.2} parent=5 // pred_region
        %s296 = ssub.s32 %s20, 1
        // Predicated region
        $region13: #{weighted_q_forward.2} parent=11 // pred_check
          %p297 = pneg %p67
        $region14: #{weighted_q_forward.2} parent=11 // pred_check_branch
          %299 = sbr.rel (%p297) target = $region16
        $region15: #{weighted_q_forward.2} parent=11 // pred_region
          _
        $region16: #{weighted_q_forward.2} parent=11 // pred_fallthru
          _
        // Predicated region
        $region17: #{weighted_q_forward.2} parent=11 // pred_check
          %p300 = pneg %p88
        $region18: #{weighted_q_forward.2} parent=11 // pred_check_branch
          %302 = sbr.rel (%p300) target = $region20
        $region19: #{weighted_q_forward.2} parent=11 // pred_region
          _
        $region20: #{weighted_q_forward.2} parent=11 // pred_fallthru
          _
        // Predicated region
        $region21: #{weighted_q_forward.2} parent=11 // pred_check
          %p303 = pneg %p109
        $region22: #{weighted_q_forward.2} parent=11 // pred_check_branch
          %305 = sbr.rel (%p303) target = $region24
        $region23: #{weighted_q_forward.2} parent=11 // pred_region
          _
        $region24: #{weighted_q_forward.2} parent=11 // pred_fallthru
          _
        // Predicated region
        $region25: #{weighted_q_forward.2} parent=11 // pred_check
          %p306 = pneg %p130
        $region26: #{weighted_q_forward.2} parent=11 // pred_check_branch
          %308 = sbr.rel (%p306) target = $region28
        $region27: #{weighted_q_forward.2} parent=11 // pred_region
          _
        $region28: #{weighted_q_forward.2} parent=11 // pred_fallthru
          _
        // Predicated region
        $region29: #{weighted_q_forward.2} parent=11 // pred_check
          %p309 = pneg %p151
        $region30: #{weighted_q_forward.2} parent=11 // pred_check_branch
          %311 = sbr.rel (%p309) target = $region32
        $region31: #{weighted_q_forward.2} parent=11 // pred_region
          _
        $region32: #{weighted_q_forward.2} parent=11 // pred_fallthru
          _
        // Predicated region
        $region33: #{weighted_q_forward.2} parent=11 // pred_check
          %p312 = pneg %p172
        $region34: #{weighted_q_forward.2} parent=11 // pred_check_branch
          %314 = sbr.rel (%p312) target = $region36
        $region35: #{weighted_q_forward.2} parent=11 // pred_region
          %s316 = ssub.s32 16, 16
          %317 = vsyncadd [#allocation3], %s316
          %s319 = sshll.u32 [#allocation2], 4
          %s320 = int_to_ptr.vmem [resolvable:$true] %s319
          %322 = dma.hbm_to_vmem [thread:$0]  %s6, 16, %s320, [#allocation3]
        $region36: #{weighted_q_forward.2} parent=11 // pred_fallthru
          _
        // Predicated region
        $region37: #{weighted_q_forward.2} parent=11 // pred_check
          %p323 = pneg %p193
        $region38: #{weighted_q_forward.2} parent=11 // pred_check_branch
          %325 = sbr.rel (%p323) target = $region40
        $region39: #{weighted_q_forward.2} parent=11 // pred_region
          _
        $region40: #{weighted_q_forward.2} parent=11 // pred_fallthru
          _
        // Predicated region
        $region41: #{weighted_q_forward.2} parent=11 // pred_check
          %p326 = pneg %p214
        $region42: #{weighted_q_forward.2} parent=11 // pred_check_branch
          %328 = sbr.rel (%p326) target = $region44
        $region43: #{weighted_q_forward.2} parent=11 // pred_region
          %s330 = ssub.s32 16, 16
          %331 = vsyncadd [#allocation5], %s330
          %s333 = sshll.u32 [#allocation4], 4
          %s334 = int_to_ptr.vmem [resolvable:$true] %s333
          %336 = dma.hbm_to_vmem [thread:$0]  %s8, 16, %s334, [#allocation5]
        $region44: #{weighted_q_forward.2} parent=11 // pred_fallthru
          _
        // Predicated region
        $region45: #{weighted_q_forward.2} parent=11 // pred_check
          %p337 = pneg %p235
        $region46: #{weighted_q_forward.2} parent=11 // pred_check_branch
          %339 = sbr.rel (%p337) target = $region48
        $region47: #{weighted_q_forward.2} parent=11 // pred_region
          %s341 = ssub.s32 1024, 1024
          %342 = vsyncadd [#allocation5], %s341
          %s343 = sshll.u32 [#allocation6], 4
          %s344 = int_to_ptr.vmem [resolvable:$true] %s343
          %349 = dma.hbm_to_vmem [thread:$0]  %s9, 1024, %s344, [#allocation5], 64, 64, 4
        $region48: #{weighted_q_forward.2} parent=11 // pred_fallthru
          _
        // Predicated region
        $region49: #{weighted_q_forward.2} parent=11 // pred_check
          %p350 = pneg %p256
        $region50: #{weighted_q_forward.2} parent=11 // pred_check_branch
          %352 = sbr.rel (%p350) target = $region52
        $region51: #{weighted_q_forward.2} parent=11 // pred_region
          %s354 = ssub.s32 16, 16
          %355 = vsyncadd [#allocation8], %s354
          %s357 = sshll.u32 [#allocation7], 4
          %s358 = int_to_ptr.vmem [resolvable:$true] %s357
          %360 = dma.hbm_to_vmem [thread:$0]  %s10, 16, %s358, [#allocation8]
        $region52: #{weighted_q_forward.2} parent=11 // pred_fallthru
          _
      $region12: #{weighted_q_forward.2} parent=5 // pred_fallthru
        _
      %p361 = scmp.lt.s32.totalorder %s20, 2
      // Predicated region
      $region53: #{weighted_q_forward.2} parent=5 // pred_check
        %p362 = pneg %p361
      $region54: #{weighted_q_forward.2} parent=5 // pred_check_branch
        %364 = sbr.rel (%p362) target = $region56
      $region55: #{weighted_q_forward.2} parent=5 // pred_region
        // Predicated region
        $region57: #{weighted_q_forward.2} parent=55 // pred_check
          %p365 = pneg %p40
        $region58: #{weighted_q_forward.2} parent=55 // pred_check_branch
          %367 = sbr.rel (%p365) target = $region60
        $region59: #{weighted_q_forward.2} parent=55 // pred_region
          %s368 = smul.u32 4, %s20
          %p369 = scmp.lt.s32.totalorder %s368, 7
          %s370 = scalar_select %p369, %s368, 7
          %s371 = smul.addr %s370, 8
          %s372 = scalar_lea.vmem %s0, %s371
          %s373 = smul.u32 4, %s20
        $region60: #{weighted_q_forward.2} parent=55 // pred_fallthru
          _
      $region56: #{weighted_q_forward.2} parent=5 // pred_fallthru
        _
      %p374 = scmp.le.s32.totalorder 1, %s20
      %p375 = scmp.lt.s32.totalorder %s20, 3
      %p376 = pnand %p374, %p375
      %p377 = pneg %p376
      // Predicated region
      $region61: #{weighted_q_forward.2} parent=5 // pred_check
        _
      $region62: #{weighted_q_forward.2} parent=5 // pred_check_branch
        %379 = sbr.rel (%p376) target = $region64
      $region63: #{weighted_q_forward.2} parent=5 // pred_region
        %s380 = ssub.s32 %s20, 1
        // Predicated region
        $region65: #{weighted_q_forward.2} parent=63 // pred_check
          %p381 = pneg %p172
        $region66: #{weighted_q_forward.2} parent=63 // pred_check_branch
          %383 = sbr.rel (%p381) target = $region68
        $region67: #{weighted_q_forward.2} parent=63 // pred_region
          %384 = dma.done [#allocation3], 16
        $region68: #{weighted_q_forward.2} parent=63 // pred_fallthru
          _
        // Predicated region
        $region69: #{weighted_q_forward.2} parent=63 // pred_check
          %p385 = pneg %p214
        $region70: #{weighted_q_forward.2} parent=63 // pred_check_branch
          %387 = sbr.rel (%p385) target = $region72
        $region71: #{weighted_q_forward.2} parent=63 // pred_region
          %388 = dma.done [#allocation5], 16
        $region72: #{weighted_q_forward.2} parent=63 // pred_fallthru
          _
        // Predicated region
        $region73: #{weighted_q_forward.2} parent=63 // pred_check
          %p389 = pneg %p235
        $region74: #{weighted_q_forward.2} parent=63 // pred_check_branch
          %391 = sbr.rel (%p389) target = $region76
        $region75: #{weighted_q_forward.2} parent=63 // pred_region
          %392 = dma.done [#allocation5], 1024
        $region76: #{weighted_q_forward.2} parent=63 // pred_fallthru
          _
        // Predicated region
        $region77: #{weighted_q_forward.2} parent=63 // pred_check
          %p393 = pneg %p256
        $region78: #{weighted_q_forward.2} parent=63 // pred_check_branch
          %395 = sbr.rel (%p393) target = $region80
        $region79: #{weighted_q_forward.2} parent=63 // pred_region
          %396 = dma.done [#allocation8], 16
        $region80: #{weighted_q_forward.2} parent=63 // pred_fallthru
          _
        %s397 = smul.u32 4, %s25
        %p398 = scmp.lt.s32.totalorder %s397, 7
        %s399 = scalar_select %p398, %s397, 7
        %s400 = smul.addr %s399, 8
        %s401 = scalar_lea.vmem %s0, %s400
        %p402 = pneg %p46
        %p403 = pneg %p43
        %p404 = pneg %p67
        %p405 = pneg %p64
        %p406 = pneg %p88
        %p407 = pneg %p85
        %p408 = pneg %p109
        %p409 = pneg %p106
        %p410 = pneg %p130
        %p411 = pneg %p127
        %p412 = pneg %p151
        %p413 = pneg %p148
        %p414 = pneg %p172
        %p415 = pneg %p169
        %p416 = pneg %p193
        %p417 = pneg %p190
        %p418 = pneg %p214
        %p419 = pneg %p211
        %p420 = pneg %p235
        %p421 = pneg %p232
        %p422 = pneg %p256
        %p423 = pneg %p253
        %p424 = pneg %p282
        %p425 = pneg %p279
        %s426 = smul.u32 4, %s25
        %p427 = scmp.lt.s32.totalorder %s426, 7
        %s428 = scalar_select %p427, %s426, 7
        %s429 = smul.addr %s428, 8
        %s430 = scalar_lea.vmem %s11, %s429
        %s431 = smul.u32 4, %s25
        %p432 = scmp.lt.s32.totalorder %s431, 7
        %s433 = scalar_select %p432, %s431, 7
        %s434 = smul.addr %s433, 8
        %s435 = scalar_lea.vmem %s0, %s434
        %s436 = smul.u32 4, %s25
        %s437 = smul.u32 4, %s25
        %p438 = scmp.lt.s32.totalorder %s437, 7
        %s439 = scalar_select %p438, %s437, 7
        %s440 = smul.addr %s439, 8
        %s441 = scalar_lea.vmem %s11, %s440
        %s442 = smul.u32 4, %s25
        %v444 = vld [vmem:[%s435] sm:$0xff]
        %v445 = vld [vmem:[%s435 + $0x8] sm:$0xff]
        %v446 = vld [vmem:[%s435 + $0x10] sm:$0xff]
        %v447 = vld [vmem:[%s435 + $0x18] sm:$0xff]
        %v448 = vld [vmem:[%s1] sm:$0x1]
        %v450 = vlaneseq
        %v451 = vshrl.u32 %v450, 7
        %v452 = vsub.s32 0, %v451
        %v453 = vrot.slane %v448, %v452
        %v455 = vmul.f32 %v444, %v453
        %v456 = vmul.f32 %v445, %v453
        %v457 = vmul.f32 %v446, %v453
        %v458 = vmul.f32 %v447, %v453
        %v459 = vld [vmem:[%s2] sm:$0x1]
        %v461 = vlaneseq
        %v462 = vshrl.u32 %v461, 7
        %v463 = vsub.s32 0, %v462
        %v464 = vrot.slane %v459, %v463
        %v466 = vadd.f32 %v455, %v464
        %v467 = vadd.f32 %v456, %v464
        %v468 = vadd.f32 %v457, %v464
        %v469 = vadd.f32 %v458, %v464
        %v470 = vpack.c.bf16 %v467, %v466
        %v471 = vpack.c.bf16 %v469, %v468
        %v472 = vld [vmem:[%s3] sm:$0xf]
        %v473 = vld [vmem:[%s3 + $0x4] sm:$0xf]
        %v474 = vld [vmem:[%s4] sm:$0x1]
        %v476 = vlaneseq
        %v477 = vshrl.u32 %v476, 7
        %v478 = vsub.s32 0, %v477
        %v479 = vrot.slane %v474, %v478
        %v483 = vunpack.c.l.b16 %v472
        %v484 = vunpack.c.l.b16 %v473
        %v485 = vpack.c.b16 %v484, %v483
        %vm487 = vcmask 130048
        %v489 = vsel %vm487, %v470, 0
        %v492 = vsel %vm487, %v471, 0
        %494 = vmatprep.subr.bf16.mxu0 0
        %495 = vmatpush1.bf16.msra.mxu0 %v485
        %496 = vmatprep.subr.bf16.mxu0 0
        %497 = vmatpush1.bf16.msra.mxu0 0
        %498 = vmatprep.subr.bf16.mxu0 0
        %499 = vmatpush1.bf16.msra.mxu0 0
        %500 = vmatprep.subr.bf16.mxu0 0
        %501 = vmatpush1.bf16.msra.mxu0 0
        %502 = vmatprep.subr.bf16.mxu0 0
        %503 = vmatpush1.bf16.msra.mxu0 0
        %504 = vmatprep.subr.bf16.mxu0 0
        %505 = vmatpush1.bf16.msra.mxu0 0
        %506 = vmatprep.subr.bf16.mxu0 0
        %507 = vmatpush1.bf16.msra.mxu0 0
        %508 = vmatprep.subr.bf16.mxu0 0
        %509 = vmatpush1.bf16.msra.mxu0 0
        %510 = vmatprep.subr.bf16.mxu0 0
        %511 = vmatpush1.bf16.msra.mxu0 0
        %512 = vmatprep.subr.bf16.mxu0 0
        %513 = vmatpush1.bf16.msra.mxu0 0
        %514 = vmatprep.subr.bf16.mxu0 0
        %515 = vmatpush1.bf16.msra.mxu0 0
        %516 = vmatprep.subr.bf16.mxu0 0
        %517 = vmatpush1.bf16.msra.mxu0 0
        %518 = vmatprep.subr.bf16.mxu0 0
        %519 = vmatpush1.bf16.msra.mxu0 0
        %520 = vmatprep.subr.bf16.mxu0 0
        %521 = vmatpush1.bf16.msra.mxu0 0
        %522 = vmatprep.subr.bf16.mxu0 0
        %523 = vmatpush1.bf16.msra.mxu0 0
        %524 = vmatprep.subr.bf16.mxu0 0
        %525 = vmatpush1.bf16.msra.mxu0 0
        %526 = vmatprep.mubr.bf16.mxu0 0
        %527 = vmatmul.mubr.bf16.gmra.mrb[0].mxu0 %v489
        %v528 = vpop.f32.mrb[0].mxu0
        %v529 = vadd.f32 %v479, %v528
        %v530 = vpop.f32.mrb[0].mxu0
        %v531 = vpop.f32.mrb[0].mxu0
        %v532 = vadd.f32 %v479, %v531
        %v533 = vpop.f32.mrb[0].mxu0
        %534 = vmatprep.mubr.bf16.mxu0 0
        %535 = vmatmul.mubr.bf16.gmra.mrb[0].mxu0 %v492
        %v536 = vpop.f32.mrb[0].mxu0
        %v537 = vadd.f32 %v479, %v536
        %v538 = vpop.f32.mrb[0].mxu0
        %v539 = vpop.f32.mrb[0].mxu0
        %v540 = vadd.f32 %v479, %v539
        %v541 = vpop.f32.mrb[0].mxu0
        %542 = vdwg.mxu0
        %v543 = vmax.f32 %v529, 0.0
        %v544 = vmax.f32 %v532, 0.0
        %v545 = vmax.f32 %v537, 0.0
        %v546 = vmax.f32 %v540, 0.0
        %v547 = vpack.c.bf16 %v544, %v543
        %v548 = vpack.c.bf16 %v546, %v545
        %v549 = vld [vmem:[%s5] sm:$0xf]
        %v550 = vld [vmem:[%s5 + $0x4] sm:$0xf]
        %v551 = vld [vmem:[%s5 + $0x8] sm:$0xf]
        %v552 = vld [vmem:[%s5 + $0xc] sm:$0xf]
        %v553 = vld [vmem:[%s5 + $0x10] sm:$0xf]
        %v554 = vld [vmem:[%s5 + $0x14] sm:$0xf]
        %v555 = vld [vmem:[%s5 + $0x18] sm:$0xf]
        %v556 = vld [vmem:[%s5 + $0x1c] sm:$0xf]
        %v557 = vld [vmem:[%s5 + $0x20] sm:$0xf]
        %v558 = vld [vmem:[%s5 + $0x24] sm:$0xf]
        %v559 = vld [vmem:[%s5 + $0x28] sm:$0xf]
        %v560 = vld [vmem:[%s5 + $0x2c] sm:$0xf]
        %v561 = vld [vmem:[%s5 + $0x30] sm:$0xf]
        %v562 = vld [vmem:[%s5 + $0x34] sm:$0xf]
        %v563 = vld [vmem:[%s5 + $0x38] sm:$0xf]
        %v564 = vld [vmem:[%s5 + $0x3c] sm:$0xf]
        %v565 = vld [vmem:[#allocation2] sm:$0x1]
        %v567 = vlaneseq
        %v568 = vshrl.u32 %v567, 7
        %v569 = vsub.s32 0, %v568
        %v570 = vrot.slane %v565, %v569
        %v588 = vunpack.c.l.b16 %v549
        %v589 = vunpack.c.l.b16 %v550
        %v590 = vunpack.c.l.b16 %v551
        %v591 = vunpack.c.l.b16 %v552
        %v592 = vunpack.c.l.b16 %v553
        %v593 = vunpack.c.l.b16 %v554
        %v594 = vunpack.c.l.b16 %v555
        %v595 = vunpack.c.l.b16 %v556
        %v596 = vunpack.c.l.b16 %v557
        %v597 = vunpack.c.l.b16 %v558
        %v598 = vunpack.c.l.b16 %v559
        %v599 = vunpack.c.l.b16 %v560
        %v600 = vunpack.c.l.b16 %v561
        %v601 = vunpack.c.l.b16 %v562
        %v602 = vunpack.c.l.b16 %v563
        %v603 = vunpack.c.l.b16 %v564
        %v604 = vpack.c.b16 %v589, %v588
        %v605 = vpack.c.b16 %v591, %v590
        %v606 = vpack.c.b16 %v593, %v592
        %v607 = vpack.c.b16 %v595, %v594
        %v608 = vpack.c.b16 %v597, %v596
        %v609 = vpack.c.b16 %v599, %v598
        %v610 = vpack.c.b16 %v601, %v600
        %v611 = vpack.c.b16 %v603, %v602
        %620 = vmatprep.subr.bf16.mxu0 0
        %621 = vmatpush1.bf16.msra.mxu0 %v604
        %622 = vmatprep.subr.bf16.mxu0 0
        %623 = vmatpush1.bf16.msra.mxu0 %v605
        %624 = vmatprep.subr.bf16.mxu0 0
        %625 = vmatpush1.bf16.msra.mxu0 %v606
        %626 = vmatprep.subr.bf16.mxu0 0
        %627 = vmatpush1.bf16.msra.mxu0 %v607
        %628 = vmatprep.subr.bf16.mxu0 0
        %629 = vmatpush1.bf16.msra.mxu0 %v608
        %630 = vmatprep.subr.bf16.mxu0 0
        %631 = vmatpush1.bf16.msra.mxu0 %v609
        %632 = vmatprep.subr.bf16.mxu0 0
        %633 = vmatpush1.bf16.msra.mxu0 %v610
        %634 = vmatprep.subr.bf16.mxu0 0
        %635 = vmatpush1.bf16.msra.mxu0 %v611
        %636 = vmatprep.subr.bf16.mxu0 0
        %637 = vmatpush1.bf16.msra.mxu0 0
        %638 = vmatprep.subr.bf16.mxu0 0
        %639 = vmatpush1.bf16.msra.mxu0 0
        %640 = vmatprep.subr.bf16.mxu0 0
        %641 = vmatpush1.bf16.msra.mxu0 0
        %642 = vmatprep.subr.bf16.mxu0 0
        %643 = vmatpush1.bf16.msra.mxu0 0
        %644 = vmatprep.subr.bf16.mxu0 0
        %645 = vmatpush1.bf16.msra.mxu0 0
        %646 = vmatprep.subr.bf16.mxu0 0
        %647 = vmatpush1.bf16.msra.mxu0 0
        %648 = vmatprep.subr.bf16.mxu0 0
        %649 = vmatpush1.bf16.msra.mxu0 0
        %650 = vmatprep.subr.bf16.mxu0 0
        %651 = vmatpush1.bf16.msra.mxu0 0
        %652 = vmatprep.mubr.bf16.mxu0 0
        %653 = vmatmul.mubr.bf16.gmra.mrb[0].mxu0 %v547
        %v654 = vpop.f32.mrb[0].mxu0
        %v655 = vadd.f32 %v570, %v654
        %v656 = vpop.f32.mrb[0].mxu0
        %v657 = vpop.f32.mrb[0].mxu0
        %v658 = vadd.f32 %v570, %v657
        %v659 = vpop.f32.mrb[0].mxu0
        %660 = vmatprep.mubr.bf16.mxu0 0
        %661 = vmatmul.mubr.bf16.gmra.mrb[0].mxu0 %v548
        %v662 = vpop.f32.mrb[0].mxu0
        %v663 = vadd.f32 %v570, %v662
        %v664 = vpop.f32.mrb[0].mxu0
        %v665 = vpop.f32.mrb[0].mxu0
        %v666 = vadd.f32 %v570, %v665
        %v667 = vpop.f32.mrb[0].mxu0
        %668 = vdwg.mxu0
        %v669 = vmax.f32 %v655, 0.0
        %v670 = vmax.f32 %v658, 0.0
        %v671 = vmax.f32 %v663, 0.0
        %v672 = vmax.f32 %v666, 0.0
        %v673 = vpack.c.bf16 %v670, %v669
        %v674 = vpack.c.bf16 %v672, %v671
        %v675 = vld [vmem:[%s7] sm:$0xf]
        %v676 = vld [vmem:[%s7 + $0x4] sm:$0xf]
        %v677 = vld [vmem:[%s7 + $0x8] sm:$0xf]
        %v678 = vld [vmem:[%s7 + $0xc] sm:$0xf]
        %v679 = vld [vmem:[%s7 + $0x10] sm:$0xf]
        %v680 = vld [vmem:[%s7 + $0x14] sm:$0xf]
        %v681 = vld [vmem:[%s7 + $0x18] sm:$0xf]
        %v682 = vld [vmem:[%s7 + $0x1c] sm:$0xf]
        %v683 = vld [vmem:[%s7 + $0x20] sm:$0xf]
        %v684 = vld [vmem:[%s7 + $0x24] sm:$0xf]
        %v685 = vld [vmem:[%s7 + $0x28] sm:$0xf]
        %v686 = vld [vmem:[%s7 + $0x2c] sm:$0xf]
        %v687 = vld [vmem:[%s7 + $0x30] sm:$0xf]
        %v688 = vld [vmem:[%s7 + $0x34] sm:$0xf]
        %v689 = vld [vmem:[%s7 + $0x38] sm:$0xf]
        %v690 = vld [vmem:[%s7 + $0x3c] sm:$0xf]
        %v691 = vld [vmem:[#allocation4] sm:$0x1]
        %v693 = vlaneseq
        %v694 = vshrl.u32 %v693, 7
        %v695 = vsub.s32 0, %v694
        %v696 = vrot.slane %v691, %v695
        %v714 = vunpack.c.l.b16 %v675
        %v715 = vunpack.c.l.b16 %v676
        %v716 = vunpack.c.l.b16 %v677
        %v717 = vunpack.c.l.b16 %v678
        %v718 = vunpack.c.l.b16 %v679
        %v719 = vunpack.c.l.b16 %v680
        %v720 = vunpack.c.l.b16 %v681
        %v721 = vunpack.c.l.b16 %v682
        %v722 = vunpack.c.l.b16 %v683
        %v723 = vunpack.c.l.b16 %v684
        %v724 = vunpack.c.l.b16 %v685
        %v725 = vunpack.c.l.b16 %v686
        %v726 = vunpack.c.l.b16 %v687
        %v727 = vunpack.c.l.b16 %v688
        %v728 = vunpack.c.l.b16 %v689
        %v729 = vunpack.c.l.b16 %v690
        %v730 = vpack.c.b16 %v715, %v714
        %v731 = vpack.c.b16 %v717, %v716
        %v732 = vpack.c.b16 %v719, %v718
        %v733 = vpack.c.b16 %v721, %v720
        %v734 = vpack.c.b16 %v723, %v722
        %v735 = vpack.c.b16 %v725, %v724
        %v736 = vpack.c.b16 %v727, %v726
        %v737 = vpack.c.b16 %v729, %v728
        %746 = vmatprep.subr.bf16.mxu0 0
        %747 = vmatpush1.bf16.msra.mxu0 %v730
        %748 = vmatprep.subr.bf16.mxu0 0
        %749 = vmatpush1.bf16.msra.mxu0 %v731
        %750 = vmatprep.subr.bf16.mxu0 0
        %751 = vmatpush1.bf16.msra.mxu0 %v732
        %752 = vmatprep.subr.bf16.mxu0 0
        %753 = vmatpush1.bf16.msra.mxu0 %v733
        %754 = vmatprep.subr.bf16.mxu0 0
        %755 = vmatpush1.bf16.msra.mxu0 %v734
        %756 = vmatprep.subr.bf16.mxu0 0
        %757 = vmatpush1.bf16.msra.mxu0 %v735
        %758 = vmatprep.subr.bf16.mxu0 0
        %759 = vmatpush1.bf16.msra.mxu0 %v736
        %760 = vmatprep.subr.bf16.mxu0 0
        %761 = vmatpush1.bf16.msra.mxu0 %v737
        %762 = vmatprep.subr.bf16.mxu0 0
        %763 = vmatpush1.bf16.msra.mxu0 0
        %764 = vmatprep.subr.bf16.mxu0 0
        %765 = vmatpush1.bf16.msra.mxu0 0
        %766 = vmatprep.subr.bf16.mxu0 0
        %767 = vmatpush1.bf16.msra.mxu0 0
        %768 = vmatprep.subr.bf16.mxu0 0
        %769 = vmatpush1.bf16.msra.mxu0 0
        %770 = vmatprep.subr.bf16.mxu0 0
        %771 = vmatpush1.bf16.msra.mxu0 0
        %772 = vmatprep.subr.bf16.mxu0 0
        %773 = vmatpush1.bf16.msra.mxu0 0
        %774 = vmatprep.subr.bf16.mxu0 0
        %775 = vmatpush1.bf16.msra.mxu0 0
        %776 = vmatprep.subr.bf16.mxu0 0
        %777 = vmatpush1.bf16.msra.mxu0 0
        %778 = vmatprep.mubr.bf16.mxu0 0
        %779 = vmatmul.mubr.bf16.gmra.mrb[0].mxu0 %v673
        %v780 = vpop.f32.mrb[0].mxu0
        %v781 = vadd.f32 %v696, %v780
        %v782 = vpop.f32.mrb[0].mxu0
        %v783 = vpop.f32.mrb[0].mxu0
        %v784 = vadd.f32 %v696, %v783
        %v785 = vpop.f32.mrb[0].mxu0
        %786 = vmatprep.mubr.bf16.mxu0 0
        %787 = vmatmul.mubr.bf16.gmra.mrb[0].mxu0 %v674
        %v788 = vpop.f32.mrb[0].mxu0
        %v789 = vadd.f32 %v696, %v788
        %v790 = vpop.f32.mrb[0].mxu0
        %v791 = vpop.f32.mrb[0].mxu0
        %v792 = vadd.f32 %v696, %v791
        %v793 = vpop.f32.mrb[0].mxu0
        %794 = vdwg.mxu0
        %v795 = vmax.f32 %v781, 0.0
        %v796 = vmax.f32 %v784, 0.0
        %v797 = vmax.f32 %v789, 0.0
        %v798 = vmax.f32 %v792, 0.0
        %v799 = vpack.c.bf16 %v796, %v795
        %v800 = vpack.c.bf16 %v798, %v797
        %v801 = vld [vmem:[#allocation6] sm:$0xf]
        %v802 = vld [vmem:[#allocation6 + $0x4] sm:$0xf]
        %v803 = vld [vmem:[#allocation6 + $0x8] sm:$0xf]
        %v804 = vld [vmem:[#allocation6 + $0xc] sm:$0xf]
        %v805 = vld [vmem:[#allocation6 + $0x10] sm:$0xf]
        %v806 = vld [vmem:[#allocation6 + $0x14] sm:$0xf]
        %v807 = vld [vmem:[#allocation6 + $0x18] sm:$0xf]
        %v808 = vld [vmem:[#allocation6 + $0x1c] sm:$0xf]
        %v809 = vld [vmem:[#allocation6 + $0x20] sm:$0xf]
        %v810 = vld [vmem:[#allocation6 + $0x24] sm:$0xf]
        %v811 = vld [vmem:[#allocation6 + $0x28] sm:$0xf]
        %v812 = vld [vmem:[#allocation6 + $0x2c] sm:$0xf]
        %v813 = vld [vmem:[#allocation6 + $0x30] sm:$0xf]
        %v814 = vld [vmem:[#allocation6 + $0x34] sm:$0xf]
        %v815 = vld [vmem:[#allocation6 + $0x38] sm:$0xf]
        %v816 = vld [vmem:[#allocation6 + $0x3c] sm:$0xf]
        %v817 = vld [vmem:[#allocation7] sm:$0x1]
        %v819 = vlaneseq
        %v820 = vshrl.u32 %v819, 7
        %v821 = vsub.s32 0, %v820
        %v822 = vrot.slane %v817, %v821
        %v840 = vunpack.c.l.b16 %v801
        %v841 = vunpack.c.l.b16 %v802
        %v842 = vunpack.c.l.b16 %v803
        %v843 = vunpack.c.l.b16 %v804
        %v844 = vunpack.c.l.b16 %v805
        %v845 = vunpack.c.l.b16 %v806
        %v846 = vunpack.c.l.b16 %v807
        %v847 = vunpack.c.l.b16 %v808
        %v848 = vunpack.c.l.b16 %v809
        %v849 = vunpack.c.l.b16 %v810
        %v850 = vunpack.c.l.b16 %v811
        %v851 = vunpack.c.l.b16 %v812
        %v852 = vunpack.c.l.b16 %v813
        %v853 = vunpack.c.l.b16 %v814
        %v854 = vunpack.c.l.b16 %v815
        %v855 = vunpack.c.l.b16 %v816
        %v856 = vpack.c.b16 %v841, %v840
        %v857 = vpack.c.b16 %v843, %v842
        %v858 = vpack.c.b16 %v845, %v844
        %v859 = vpack.c.b16 %v847, %v846
        %v860 = vpack.c.b16 %v849, %v848
        %v861 = vpack.c.b16 %v851, %v850
        %v862 = vpack.c.b16 %v853, %v852
        %v863 = vpack.c.b16 %v855, %v854
        %872 = vmatprep.subr.bf16.mxu0 0
        %873 = vmatpush1.bf16.msra.mxu0 %v856
        %874 = vmatprep.subr.bf16.mxu0 0
        %875 = vmatpush1.bf16.msra.mxu0 %v857
        %876 = vmatprep.subr.bf16.mxu0 0
        %877 = vmatpush1.bf16.msra.mxu0 %v858
        %878 = vmatprep.subr.bf16.mxu0 0
        %879 = vmatpush1.bf16.msra.mxu0 %v859
        %880 = vmatprep.subr.bf16.mxu0 0
        %881 = vmatpush1.bf16.msra.mxu0 %v860
        %882 = vmatprep.subr.bf16.mxu0 0
        %883 = vmatpush1.bf16.msra.mxu0 %v861
        %884 = vmatprep.subr.bf16.mxu0 0
        %885 = vmatpush1.bf16.msra.mxu0 %v862
        %886 = vmatprep.subr.bf16.mxu0 0
        %887 = vmatpush1.bf16.msra.mxu0 %v863
        %888 = vmatprep.subr.bf16.mxu0 0
        %889 = vmatpush1.bf16.msra.mxu0 0
        %890 = vmatprep.subr.bf16.mxu0 0
        %891 = vmatpush1.bf16.msra.mxu0 0
        %892 = vmatprep.subr.bf16.mxu0 0
        %893 = vmatpush1.bf16.msra.mxu0 0
        %894 = vmatprep.subr.bf16.mxu0 0
        %895 = vmatpush1.bf16.msra.mxu0 0
        %896 = vmatprep.subr.bf16.mxu0 0
        %897 = vmatpush1.bf16.msra.mxu0 0
        %898 = vmatprep.subr.bf16.mxu0 0
        %899 = vmatpush1.bf16.msra.mxu0 0
        %900 = vmatprep.subr.bf16.mxu0 0
        %901 = vmatpush1.bf16.msra.mxu0 0
        %902 = vmatprep.subr.bf16.mxu0 0
        %903 = vmatpush1.bf16.msra.mxu0 0
        %904 = vmatprep.mubr.bf16.mxu0 0
        %905 = vmatmul.mubr.bf16.gmra.mrb[0].mxu0 %v799
        %v906 = vpop.f32.mrb[0].mxu0
        %v907 = vadd.f32 %v822, %v906
        %v908 = vpop.f32.mrb[0].mxu0
        %v909 = vpop.f32.mrb[0].mxu0
        %v910 = vadd.f32 %v822, %v909
        %v911 = vpop.f32.mrb[0].mxu0
        %912 = vmatprep.mubr.bf16.mxu0 0
        %913 = vmatmul.mubr.bf16.gmra.mrb[0].mxu0 %v800
        %v914 = vpop.f32.mrb[0].mxu0
        %v915 = vadd.f32 %v822, %v914
        %v916 = vpop.f32.mrb[0].mxu0
        %v917 = vpop.f32.mrb[0].mxu0
        %v918 = vadd.f32 %v822, %v917
        %v919 = vpop.f32.mrb[0].mxu0
        %920 = vdwg.mxu0
        %v921 = vmax.f32 %v907, 0.0
        %v922 = vmax.f32 %v910, 0.0
        %v923 = vmax.f32 %v915, 0.0
        %v924 = vmax.f32 %v918, 0.0
        %v925 = vadd.f32 %v543, %v921
        %v926 = vadd.f32 %v544, %v922
        %v927 = vadd.f32 %v545, %v923
        %v928 = vadd.f32 %v546, %v924
        %929 = vst [vmem:[%s441] sm:$0xff] %v925
        %930 = vst [vmem:[%s441 + $0x8] sm:$0xff] %v926
        %931 = vst [vmem:[%s441 + $0x10] sm:$0xff] %v927
        %932 = vst [vmem:[%s441 + $0x18] sm:$0xff] %v928
        %s933 = smul.u32 4, %s25
        %p934 = scmp.lt.s32.totalorder %s933, 7
        %s935 = scalar_select %p934, %s933, 7
        %s936 = smul.addr %s935, 8
        %s937 = scalar_lea.vmem %s11, %s936
        // Predicated region
        $region81: #{weighted_q_forward.2} parent=63 // pred_check
          %p938 = pneg %p279
        $region82: #{weighted_q_forward.2} parent=63 // pred_check_branch
          %940 = sbr.rel (%p938) target = $region84
        $region83: #{weighted_q_forward.2} parent=63 // pred_region
          %s941 = smul.u32 4, %s25
        $region84: #{weighted_q_forward.2} parent=63 // pred_fallthru
          _
      $region64: #{weighted_q_forward.2} parent=5 // pred_fallthru
        _
      %p942 = scmp.le.s32.totalorder 2, %s20
      // Predicated region
      $region85: #{weighted_q_forward.2} parent=5 // pred_check
        %p943 = pneg %p942
      $region86: #{weighted_q_forward.2} parent=5 // pred_check_branch
        %945 = sbr.rel (%p943) target = $region88
      $region87: #{weighted_q_forward.2} parent=5 // pred_region
        %s946 = ssub.s32 %s20, 2
        // Predicated region
        $region89: #{weighted_q_forward.2} parent=87 // pred_check
          %p947 = pneg %p285
        $region90: #{weighted_q_forward.2} parent=87 // pred_check_branch
          %949 = sbr.rel (%p947) target = $region92
        $region91: #{weighted_q_forward.2} parent=87 // pred_region
          %s950 = smul.u32 4, %s26
          %p951 = scmp.lt.s32.totalorder %s950, 7
          %s952 = scalar_select %p951, %s950, 7
          %s953 = smul.addr %s952, 8
          %s954 = scalar_lea.vmem %s11, %s953
        $region92: #{weighted_q_forward.2} parent=87 // pred_fallthru
          _
      $region88: #{weighted_q_forward.2} parent=5 // pred_fallthru
        _
    $region6: #{weighted_q_forward.2} parent=1 // loop_footer
      %s24 = sadd.s32 1, %s20
    $region7: #{weighted_q_forward.2} parent=1 // loop_footer_branch
      %19 = sbr.rel target = $region3
    $region8: #{weighted_q_forward.2} parent=1 // loop_exit
      _
    %955 = vsyncpa [#allocation3], 1
    %s956 = scalar_lea.sflag [#allocation3], 1
    %957 = vsyncpa %s956, 1
    %958 = vsyncpa [#allocation5], 1
    %959 = vsyncpa [#allocation8], 1

</llo_original>
